<compile_context>
chip_gen: v7x
topology: tpu7x:2x2x1
jax: 0.10.0
libtpu: 0.0.40
codegen_flags: <defaults>
</compile_context>

<pallas_src>
import math

import jax
import jax.numpy as jnp
import numpy as np
from jax.experimental import pallas as pl
from jax.experimental.pallas import tpu as pltpu

# ---- module hyper-parameters (MLPDecoder.__init__ args) ------------------------------
N_IN_NODE = 4      # per-node feature dim D
EDGE_TYPES = 2
MSG_HID = 32
MSG_OUT = 32
N_HID = 32
DO_PROB = 0.0      # F.dropout with p=0.0 is the identity -> exact match
SKIP_FIRST = True  # skip_first_edge_type; also makes rel_type[..., i:] broadcast well-defined
START_IDX = 1 if SKIP_FIRST else 0
# TODO(synk): nonzero dropout would need in-kernel pltpu.prng_seed/prng_random_bits; with
#             DO_PROB == 0.0 dropout is the identity, so it is omitted.


# ---------------------------------------------------------------------------------------
# Kernel factory: one grid step processes a tile of BT_TILE (batch*time) slices at once.
#   x_ref   : [N, BT_TILE, D]           (node-major, bt in the sublane dim)
#   rt_ref  : [E, BT_TILE, EDGE_TYPES]  (edge-major)
#   out_ref : [BT_TILE, N*D]            (lane-dense output slab)
# send_idx / recv_idx are static Python ints derived from the one-hot rel_send / rel_rec.
# ---------------------------------------------------------------------------------------
def _make_step_kernel(n_atoms, bt_tile, send_idx, recv_idx, n_active):
    E = len(send_idx)
    recv_groups = [[e for e in range(E) if recv_idx[e] == n] for n in range(n_atoms)]

    def kernel(x_ref, rt_ref, w1s_ref, w1r_ref, b1_ref, w2_ref, b2_ref,
               wo1x_ref, wo1m_ref, bo1_ref, wo2_ref, bo2_ref, wo3_ref, bo3_ref,
               out_ref):
        Bt = bt_tile
        N = n_atoms
        # node-major rows: row = n * Bt + bt
        x_all = jnp.concatenate([x_ref[n] for n in range(N)], axis=0)     # [N*Bt, D]
        rt = rt_ref[...]                                                  # [E, Bt, EDGE_TYPES]

        all_msgs = None                                                   # -> [E*Bt, MSG_OUT]
        for j in range(n_active):                                         # static unroll
            i = START_IDX + j
            # msg_fc1 fused with the edge gather / concat:
            #   pre_msg @ W1 == senders @ W1[:D] + receivers @ W1[D:]
            # compute the two per-node projections once (N*Bt rows instead of E*Bt rows)
            ps = jnp.dot(x_all, w1s_ref[j], preferred_element_type=jnp.float32)  # [N*Bt, H]
            pr = jnp.dot(x_all, w1r_ref[j], preferred_element_type=jnp.float32)  # [N*Bt, H]
            # per-edge gather is now just a sublane-aligned add; rows ordered (e, bt)
            h = jnp.concatenate(
                [ps[s * Bt:(s + 1) * Bt, :] + pr[r * Bt:(r + 1) * Bt, :]
                 for s, r in zip(send_idx, recv_idx)], axis=0)            # [E*Bt, MSG_HID]
            h = jnp.maximum(h + b1_ref[j], 0.0)
            # F.dropout(msg, p=0.0) is identity (DO_PROB == 0.0)
            m = jnp.maximum(
                jnp.dot(h, w2_ref[j], preferred_element_type=jnp.float32)
                + b2_ref[j], 0.0)                                         # [E*Bt, MSG_OUT]
            # same broadcast semantics as torch rel_type[:, :, :, i:]
            scale = jnp.concatenate([rt[e, :, i:] for e in range(E)], axis=0)  # [E*Bt, ET-i]
            contrib = m * scale
            all_msgs = contrib if all_msgs is None else all_msgs + contrib
        if all_msgs is None:
            all_msgs = jnp.zeros((E * Bt, MSG_OUT), jnp.float32)

        # scatter-add over incoming edges (replaces rel_rec^T @ all_msgs) -> agg per node
        aggs = []
        for n in range(N):
            es = recv_groups[n]
            if not es:
                aggs.append(jnp.zeros((Bt, MSG_OUT), jnp.float32))
                continue
            a = all_msgs[es[0] * Bt:(es[0] + 1) * Bt, :]
            for e in es[1:]:
                a = a + all_msgs[e * Bt:(e + 1) * Bt, :]
            aggs.append(a)                                                # [Bt, MSG_OUT]
        agg_all = jnp.concatenate(aggs, axis=0)                           # [N*Bt, MSG_OUT]

        # out MLP; the aug lane-concat is fused:  aug @ Wo1 == x @ Wo1[:D] + agg @ Wo1[D:]
        p = jnp.maximum(
            jnp.dot(x_all, wo1x_ref[...], preferred_element_type=jnp.float32)
            + jnp.dot(agg_all, wo1m_ref[...], preferred_element_type=jnp.float32)
            + bo1_ref[...], 0.0)                                          # [N*Bt, N_HID]
        p = jnp.maximum(
            jnp.dot(p, wo2_ref[...], preferred_element_type=jnp.float32) + bo2_ref[...], 0.0)
        p = jnp.dot(p, wo3_ref[...], preferred_element_type=jnp.float32) + bo3_ref[...]
        y = x_all + p                                                     # residual, [N*Bt, D]

        # lane-dense output slab [Bt, N*D] (lanes ordered (n, d))
        out_ref[...] = jnp.concatenate(
            [y[n * Bt:(n + 1) * Bt, :] for n in range(N)], axis=-1).astype(out_ref.dtype)

    return kernel


# ---------------------------------------------------------------------------------------
# single_step_forward wrapper: all (B, T) slices go through one pallas_call.
# ---------------------------------------------------------------------------------------
def single_step_forward(x, rel_rec, rel_send, rel_type, params):
    # x: [B, T, N, D]; rel_type: [B, T, E, EDGE_TYPES]; rel_rec/rel_send: [E, N] one-hot.
    B, T, N, D = x.shape
    E = rel_rec.shape[0]
    BT = B * T
    n_active = EDGE_TYPES - START_IDX

    for i in range(START_IDX, EDGE_TYPES):
        # guard: rel_type[..., i:] broadcast against [..., MSG_OUT] must be well-defined
        assert EDGE_TYPES - i in (1, MSG_OUT), "invalid SKIP_FIRST / EDGE_TYPES configuration"

    # static graph: extract send/recv indices from the one-hot connectivity matrices (eager)
    rr_np = np.asarray(rel_rec)
    rs_np = np.asarray(rel_send)
    recv_idx = tuple(int(v) for v in rr_np.argmax(axis=1))
    send_idx = tuple(int(v) for v in rs_np.argmax(axis=1))
    assert np.allclose(rr_np, np.eye(N, dtype=rr_np.dtype)[list(recv_idx)])
    assert np.allclose(rs_np, np.eye(N, dtype=rs_np.dtype)[list(send_idx)])

    # layouts the kernel wants: node-major x, edge-major rel_type; bt lives in the sublane dim
    xT = jnp.transpose(x.reshape(BT, N, D), (1, 0, 2))                    # [N, BT, D]
    rtT = jnp.transpose(rel_type.reshape(BT, E, EDGE_TYPES), (1, 0, 2))   # [E, BT, EDGE_TYPES]

    # >= 2 parallel grid steps (keeps both v7x TensorCores busy) when the tile stays 8-aligned
    G = 2 if (BT % 2 == 0 and (BT // 2) % 8 == 0) else 1
    bt_tile = BT // G

    # static weight splits (done once in XLA, not per grid step):
    #   * only the active edge types are shipped to the kernel
    #   * the concat-matmuls are pre-split so the kernel never builds pre_msg / aug
    w1, b1, w2, b2, wo1, bo1, wo2, bo2, wo3, bo3 = params
    w1s = w1[START_IDX:, :D, :]     # sender   half of msg_fc1, [A, D, MSG_HID]
    w1r = w1[START_IDX:, D:, :]     # receiver half of msg_fc1, [A, D, MSG_HID]
    b1a = b1[START_IDX:]            # [A, 1, MSG_HID]
    w2a = w2[START_IDX:]            # [A, MSG_HID, MSG_OUT]
    b2a = b2[START_IDX:]            # [A, 1, MSG_OUT]
    wo1x = wo1[:D, :]               # x   half of out_fc1, [D, N_HID]
    wo1m = wo1[D:, :]               # agg half of out_fc1, [MSG_OUT, N_HID]

    kernel = _make_step_kernel(N, bt_tile, send_idx, recv_idx, n_active)

    def full_spec(a):
        nd = a.ndim
        return pl.BlockSpec(a.shape, lambda i, nd=nd: (0,) * nd)

    in_specs = [
        pl.BlockSpec((N, bt_tile, D), lambda i: (0, i, 0)),               # x (node-major)
        pl.BlockSpec((E, bt_tile, EDGE_TYPES), lambda i: (0, i, 0)),      # rel_type (edge-major)
        full_spec(w1s), full_spec(w1r), full_spec(b1a),                   # msg_fc1 (split)
        full_spec(w2a), full_spec(b2a),                                   # msg_fc2
        full_spec(wo1x), full_spec(wo1m), full_spec(bo1),                 # out_fc1 (split)
        full_spec(wo2), full_spec(bo2),                                   # out_fc2
        full_spec(wo3), full_spec(bo3),                                   # out_fc3
    ]
    out_spec = pl.BlockSpec((bt_tile, N * D), lambda i: (i, 0))

    out = pl.pallas_call(
        kernel,
        out_shape=jax.ShapeDtypeStruct((BT, N * D), jnp.float32),
        grid=(G,),
        in_specs=in_specs,
        out_specs=out_spec,
        compiler_params=pltpu.CompilerParams(dimension_semantics=("parallel",)),
    )(xT, rtT, w1s, w1r, b1a, w2a, b2a, wo1x, wo1m, bo1, wo2, bo2, wo3, bo3)
    return out.reshape(B, T, N, D)


# ---------------------------------------------------------------------------------------
# MLPDecoder.forward (plain-JAX glue around the kernel)
# ---------------------------------------------------------------------------------------
def mlp_decoder_forward(inputs, rel_type, rel_rec, rel_send, params, pred_steps=1,
                        step_fn=single_step_forward):
    # inputs: [B, N, T, D]  (PyTorch layout) -> transpose(1, 2)
    x = jnp.transpose(inputs, (0, 2, 1, 3))                       # [B, T, N, D]
    B, T, N, D = x.shape
    left = ((T - 1) // pred_steps + 1) * pred_steps - T
    assert left == 0, "rel_type padding branch only reachable for pred_steps > 1"
    assert pred_steps <= T

    # TODO(synk): for pred_steps > 1, fuse this Python loop into a single pallas_call carrying
    #             the state in VMEM instead of an HBM round-trip per step.
    preds = []
    last_pred = x[:, 0::pred_steps]
    for step in range(pred_steps):
        last_pred = step_fn(last_pred, rel_rec, rel_send,
                            rel_type[:, step::pred_steps], params)
        preds.append(last_pred)

    Tp = preds[0].shape[1]
    output = jnp.zeros((B, Tp * pred_steps, N, D), jnp.float32)
    for i in range(len(preds)):
        output = output.at[:, i::pred_steps].set(preds[i])
    pred_all = output[:, :T - 1]
    return jnp.transpose(pred_all, (0, 2, 1, 3))                  # [B, N, T-1, D]


# ---------------------------------------------------------------------------------------
# Pure-JAX reference (for correctness check only)
# ---------------------------------------------------------------------------------------
def _reference_single_step(x, rel_rec, rel_send, rel_type, params):
    w1, b1, w2, b2, wo1, bo1, wo2, bo2, wo3, bo3 = params
    receivers = jnp.einsum('en,btnd->bted', rel_rec, x)
    senders = jnp.einsum('en,btnd->bted', rel_send, x)
    pre_msg = jnp.concatenate([senders, receivers], axis=-1)
    all_msgs = jnp.zeros(pre_msg.shape[:3] + (MSG_OUT,), jnp.float32)
    for i in range(START_IDX, EDGE_TYPES):
        h = jax.nn.relu(pre_msg @ w1[i] + b1[i, 0])
        m = jax.nn.relu(h @ w2[i] + b2[i, 0])
        m = m * rel_type[:, :, :, i:]
        all_msgs = all_msgs + m
    agg = jnp.einsum('en,btem->btnm', rel_rec, all_msgs)
    aug = jnp.concatenate([x, agg], axis=-1)
    p = jax.nn.relu(aug @ wo1 + bo1[0])
    p = jax.nn.relu(p @ wo2 + bo2[0])
    p = p @ wo3 + bo3[0]
    return x + p


# ---------------------------------------------------------------------------------------
# Deterministic parameter init (PyTorch nn.Linear shapes, stored as [in, out])
# ---------------------------------------------------------------------------------------
def init_params(key):
    def linear(k, fan_in, fan_out):
        k1, k2 = jax.random.split(k)
        bound = 1.0 / math.sqrt(fan_in)
        w = jax.random.uniform(k1, (fan_in, fan_out), jnp.float32, -bound, bound)
        b = jax.random.uniform(k2, (1, fan_out), jnp.float32, -bound, bound)
        return w, b

    keys = jax.random.split(key, 2 * EDGE_TYPES + 3)
    w1s, b1s, w2s, b2s = [], [], [], []
    for i in range(EDGE_TYPES):
        w, b = linear(keys[i], 2 * N_IN_NODE, MSG_HID)
        w1s.append(w); b1s.append(b)
        w, b = linear(keys[EDGE_TYPES + i], MSG_HID, MSG_OUT)
        w2s.append(w); b2s.append(b)
    w1, b1 = jnp.stack(w1s), jnp.stack(b1s)     # [ET, 2D, MSG_HID], [ET, 1, MSG_HID]
    w2, b2 = jnp.stack(w2s), jnp.stack(b2s)     # [ET, MSG_HID, MSG_OUT], [ET, 1, MSG_OUT]
    wo1, bo1 = linear(keys[2 * EDGE_TYPES + 0], N_IN_NODE + MSG_OUT, N_HID)
    wo2, bo2 = linear(keys[2 * EDGE_TYPES + 1], N_HID, N_HID)
    wo3, bo3 = linear(keys[2 * EDGE_TYPES + 2], N_HID, N_IN_NODE)
    return (w1, b1, w2, b2, wo1, bo1, wo2, bo2, wo3, bo3)


if __name__ == "__main__":
    key = jax.random.PRNGKey(0)
    k_param, k_x, k_rt = jax.random.split(key, 3)

    params = init_params(k_param)

    B, N, T, D = 2, 4, 8, N_IN_NODE          # batch, atoms, timesteps, feature dim
    E = N * (N - 1)                          # fully connected graph w/o self loops

    inputs = jax.random.normal(k_x, (B, N, T, D), jnp.float32)        # PyTorch layout [B, N, T, D]
    rel_type = jax.nn.softmax(
        jax.random.normal(k_rt, (B, T, E, EDGE_TYPES), jnp.float32), axis=-1)

    off_diag = np.ones((N, N)) - np.eye(N)
    recv_idx, send_idx = np.where(off_diag)
    eye = np.eye(N, dtype=np.float32)
    rel_rec = jnp.asarray(eye[recv_idx])     # [E, N]
    rel_send = jnp.asarray(eye[send_idx])    # [E, N]

    out = mlp_decoder_forward(inputs, rel_type, rel_rec, rel_send, params, pred_steps=1)
    out = jax.block_until_ready(out)
    assert out.shape == (B, N, T - 1, D)

    ref = mlp_decoder_forward(inputs, rel_type, rel_rec, rel_send, params,
                              pred_steps=1, step_fn=_reference_single_step)
    np.testing.assert_allclose(np.asarray(out), np.asarray(ref), rtol=1e-5, atol=1e-5)

    print("KERNEL_OK")
</pallas_src>

<mosaic_0001>
module attributes {stable_mosaic.version = 11 : i64} {
  func.func @kernel(%arg0: i32, %arg1: memref<4x8x4xf32, #tpu.memory_space<vmem>>, %arg2: memref<12x8x2xf32, #tpu.memory_space<vmem>>, %arg3: memref<1x4x32xf32, #tpu.memory_space<vmem>>, %arg4: memref<1x4x32xf32, #tpu.memory_space<vmem>>, %arg5: memref<1x1x32xf32, #tpu.memory_space<vmem>>, %arg6: memref<1x32x32xf32, #tpu.memory_space<vmem>>, %arg7: memref<1x1x32xf32, #tpu.memory_space<vmem>>, %arg8: memref<4x32xf32, #tpu.memory_space<vmem>>, %arg9: memref<32x32xf32, #tpu.memory_space<vmem>>, %arg10: memref<1x32xf32, #tpu.memory_space<vmem>>, %arg11: memref<32x32xf32, #tpu.memory_space<vmem>>, %arg12: memref<1x32xf32, #tpu.memory_space<vmem>>, %arg13: memref<32x4xf32, #tpu.memory_space<vmem>>, %arg14: memref<1x4xf32, #tpu.memory_space<vmem>>, %arg15: memref<8x16xf32, #tpu.memory_space<vmem>>) attributes {dimension_semantics = [#tpu.dimension_semantics<parallel>], iteration_bounds = array<i64: 2>, scalar_prefetch = 0 : i64, scratch_operands = 0 : i64, tpu.core_type = #tpu.core_type<tc>, window_params = [{transform_indices = @transform_0, window_bounds = array<i64: 4, 8, 4>}, {transform_indices = @transform_1, window_bounds = array<i64: 12, 8, 2>}, {pipeline_mode = #tpu.pipeline_mode<synchronous>, transform_indices = @transform_2, window_bounds = array<i64: 1, 4, 32>}, {pipeline_mode = #tpu.pipeline_mode<synchronous>, transform_indices = @transform_3, window_bounds = array<i64: 1, 4, 32>}, {pipeline_mode = #tpu.pipeline_mode<synchronous>, transform_indices = @transform_4, window_bounds = array<i64: 1, 1, 32>}, {pipeline_mode = #tpu.pipeline_mode<synchronous>, transform_indices = @transform_5, window_bounds = array<i64: 1, 32, 32>}, {pipeline_mode = #tpu.pipeline_mode<synchronous>, transform_indices = @transform_6, window_bounds = array<i64: 1, 1, 32>}, {pipeline_mode = #tpu.pipeline_mode<synchronous>, transform_indices = @transform_7, window_bounds = array<i64: 4, 32>}, {pipeline_mode = #tpu.pipeline_mode<synchronous>, transform_indices = @transform_8, window_bounds = array<i64: 32, 32>}, {pipeline_mode = #tpu.pipeline_mode<synchronous>, transform_indices = @transform_9, window_bounds = array<i64: 1, 32>}, {pipeline_mode = #tpu.pipeline_mode<synchronous>, transform_indices = @transform_10, window_bounds = array<i64: 32, 32>}, {pipeline_mode = #tpu.pipeline_mode<synchronous>, transform_indices = @transform_11, window_bounds = array<i64: 1, 32>}, {pipeline_mode = #tpu.pipeline_mode<synchronous>, transform_indices = @transform_12, window_bounds = array<i64: 32, 4>}, {pipeline_mode = #tpu.pipeline_mode<synchronous>, transform_indices = @transform_13, window_bounds = array<i64: 1, 4>}, {transform_indices = @transform_14, window_bounds = array<i64: 8, 16>}]} {
    %c0 = arith.constant 0 : index
    %c0_0 = arith.constant 0 : index
    %c0_1 = arith.constant 0 : index
    %0 = vector.load %arg1[%c0, %c0_0, %c0_1] : memref<4x8x4xf32, #tpu.memory_space<vmem>>, vector<1x8x4xf32>
    %1 = vector.shape_cast %0 : vector<1x8x4xf32> to vector<8x4xf32>
    %c1 = arith.constant 1 : index
    %c0_2 = arith.constant 0 : index
    %c0_3 = arith.constant 0 : index
    %2 = vector.load %arg1[%c1, %c0_2, %c0_3] : memref<4x8x4xf32, #tpu.memory_space<vmem>>, vector<1x8x4xf32>
    %3 = vector.shape_cast %2 : vector<1x8x4xf32> to vector<8x4xf32>
    %c2 = arith.constant 2 : index
    %c0_4 = arith.constant 0 : index
    %c0_5 = arith.constant 0 : index
    %4 = vector.load %arg1[%c2, %c0_4, %c0_5] : memref<4x8x4xf32, #tpu.memory_space<vmem>>, vector<1x8x4xf32>
    %5 = vector.shape_cast %4 : vector<1x8x4xf32> to vector<8x4xf32>
    %c3 = arith.constant 3 : index
    %c0_6 = arith.constant 0 : index
    %c0_7 = arith.constant 0 : index
    %6 = vector.load %arg1[%c3, %c0_6, %c0_7] : memref<4x8x4xf32, #tpu.memory_space<vmem>>, vector<1x8x4xf32>
    %7 = vector.shape_cast %6 : vector<1x8x4xf32> to vector<8x4xf32>
    %8 = tpu.concatenate %1, %3, %5, %7 in 0 : vector<8x4xf32>, vector<8x4xf32>, vector<8x4xf32>, vector<8x4xf32> -> vector<32x4xf32>
    %c0_8 = arith.constant 0 : index
    %c0_9 = arith.constant 0 : index
    %c0_10 = arith.constant 0 : index
    %9 = vector.load %arg2[%c0_8, %c0_9, %c0_10] : memref<12x8x2xf32, #tpu.memory_space<vmem>>, vector<12x8x2xf32>
    %c0_11 = arith.constant 0 : index
    %c0_12 = arith.constant 0 : index
    %c0_13 = arith.constant 0 : index
    %10 = vector.load %arg3[%c0_11, %c0_12, %c0_13] : memref<1x4x32xf32, #tpu.memory_space<vmem>>, vector<1x4x32xf32>
    %11 = vector.shape_cast %10 : vector<1x4x32xf32> to vector<4x32xf32>
    %cst = arith.constant dense<0.000000e+00> : vector<32x32xf32>
    %12 = tpu.matmul %8, %11, %cst {dimension_numbers = #tpu.dot_dimension_numbers<[1], [0], [0], [1], [0, 0, 1, 1], [], []>} : vector<32x4xf32>, vector<4x32xf32>, vector<32x32xf32> -> vector<32x32xf32>
    %c0_14 = arith.constant 0 : index
    %c0_15 = arith.constant 0 : index
    %c0_16 = arith.constant 0 : index
    %13 = vector.load %arg4[%c0_14, %c0_15, %c0_16] : memref<1x4x32xf32, #tpu.memory_space<vmem>>, vector<1x4x32xf32>
    %14 = vector.shape_cast %13 : vector<1x4x32xf32> to vector<4x32xf32>
    %cst_17 = arith.constant dense<0.000000e+00> : vector<32x32xf32>
    %15 = tpu.matmul %8, %14, %cst_17 {dimension_numbers = #tpu.dot_dimension_numbers<[1], [0], [0], [1], [0, 0, 1, 1], [], []>} : vector<32x4xf32>, vector<4x32xf32>, vector<32x32xf32> -> vector<32x32xf32>
    %16 = vector.extract_strided_slice %12 {offsets = [8, 0], sizes = [8, 32], strides = [1, 1]} : vector<32x32xf32> to vector<8x32xf32>
    %17 = vector.extract_strided_slice %15 {offsets = [0, 0], sizes = [8, 32], strides = [1, 1]} : vector<32x32xf32> to vector<8x32xf32>
    %18 = arith.addf %16, %17 : vector<8x32xf32>
    %19 = vector.extract_strided_slice %12 {offsets = [16, 0], sizes = [8, 32], strides = [1, 1]} : vector<32x32xf32> to vector<8x32xf32>
    %20 = vector.extract_strided_slice %15 {offsets = [0, 0], sizes = [8, 32], strides = [1, 1]} : vector<32x32xf32> to vector<8x32xf32>
    %21 = arith.addf %19, %20 : vector<8x32xf32>
    %22 = vector.extract_strided_slice %12 {offsets = [24, 0], sizes = [8, 32], strides = [1, 1]} : vector<32x32xf32> to vector<8x32xf32>
    %23 = vector.extract_strided_slice %15 {offsets = [0, 0], sizes = [8, 32], strides = [1, 1]} : vector<32x32xf32> to vector<8x32xf32>
    %24 = arith.addf %22, %23 : vector<8x32xf32>
    %25 = vector.extract_strided_slice %12 {offsets = [0, 0], sizes = [8, 32], strides = [1, 1]} : vector<32x32xf32> to vector<8x32xf32>
    %26 = vector.extract_strided_slice %15 {offsets = [8, 0], sizes = [8, 32], strides = [1, 1]} : vector<32x32xf32> to vector<8x32xf32>
    %27 = arith.addf %25, %26 : vector<8x32xf32>
    %28 = vector.extract_strided_slice %12 {offsets = [16, 0], sizes = [8, 32], strides = [1, 1]} : vector<32x32xf32> to vector<8x32xf32>
    %29 = vector.extract_strided_slice %15 {offsets = [8, 0], sizes = [8, 32], strides = [1, 1]} : vector<32x32xf32> to vector<8x32xf32>
    %30 = arith.addf %28, %29 : vector<8x32xf32>
    %31 = vector.extract_strided_slice %12 {offsets = [24, 0], sizes = [8, 32], strides = [1, 1]} : vector<32x32xf32> to vector<8x32xf32>
    %32 = vector.extract_strided_slice %15 {offsets = [8, 0], sizes = [8, 32], strides = [1, 1]} : vector<32x32xf32> to vector<8x32xf32>
    %33 = arith.addf %31, %32 : vector<8x32xf32>
    %34 = vector.extract_strided_slice %12 {offsets = [0, 0], sizes = [8, 32], strides = [1, 1]} : vector<32x32xf32> to vector<8x32xf32>
    %35 = vector.extract_strided_slice %15 {offsets = [16, 0], sizes = [8, 32], strides = [1, 1]} : vector<32x32xf32> to vector<8x32xf32>
    %36 = arith.addf %34, %35 : vector<8x32xf32>
    %37 = vector.extract_strided_slice %12 {offsets = [8, 0], sizes = [8, 32], strides = [1, 1]} : vector<32x32xf32> to vector<8x32xf32>
    %38 = vector.extract_strided_slice %15 {offsets = [16, 0], sizes = [8, 32], strides = [1, 1]} : vector<32x32xf32> to vector<8x32xf32>
    %39 = arith.addf %37, %38 : vector<8x32xf32>
    %40 = vector.extract_strided_slice %12 {offsets = [24, 0], sizes = [8, 32], strides = [1, 1]} : vector<32x32xf32> to vector<8x32xf32>
    %41 = vector.extract_strided_slice %15 {offsets = [16, 0], sizes = [8, 32], strides = [1, 1]} : vector<32x32xf32> to vector<8x32xf32>
    %42 = arith.addf %40, %41 : vector<8x32xf32>
    %43 = vector.extract_strided_slice %12 {offsets = [0, 0], sizes = [8, 32], strides = [1, 1]} : vector<32x32xf32> to vector<8x32xf32>
    %44 = vector.extract_strided_slice %15 {offsets = [24, 0], sizes = [8, 32], strides = [1, 1]} : vector<32x32xf32> to vector<8x32xf32>
    %45 = arith.addf %43, %44 : vector<8x32xf32>
    %46 = vector.extract_strided_slice %12 {offsets = [8, 0], sizes = [8, 32], strides = [1, 1]} : vector<32x32xf32> to vector<8x32xf32>
    %47 = vector.extract_strided_slice %15 {offsets = [24, 0], sizes = [8, 32], strides = [1, 1]} : vector<32x32xf32> to vector<8x32xf32>
    %48 = arith.addf %46, %47 : vector<8x32xf32>
    %49 = vector.extract_strided_slice %12 {offsets = [16, 0], sizes = [8, 32], strides = [1, 1]} : vector<32x32xf32> to vector<8x32xf32>
    %50 = vector.extract_strided_slice %15 {offsets = [24, 0], sizes = [8, 32], strides = [1, 1]} : vector<32x32xf32> to vector<8x32xf32>
    %51 = arith.addf %49, %50 : vector<8x32xf32>
    %52 = tpu.concatenate %18, %21, %24, %27, %30, %33, %36, %39, %42, %45, %48, %51 in 0 : vector<8x32xf32>, vector<8x32xf32>, vector<8x32xf32>, vector<8x32xf32>, vector<8x32xf32>, vector<8x32xf32>, vector<8x32xf32>, vector<8x32xf32>, vector<8x32xf32>, vector<8x32xf32>, vector<8x32xf32>, vector<8x32xf32> -> vector<96x32xf32>
    %c0_18 = arith.constant 0 : index
    %c0_19 = arith.constant 0 : index
    %c0_20 = arith.constant 0 : index
    %53 = vector.load %arg5[%c0_18, %c0_19, %c0_20] : memref<1x1x32xf32, #tpu.memory_space<vmem>>, vector<1x1x32xf32>
    %54 = vector.shape_cast %53 : vector<1x1x32xf32> to vector<1x32xf32>
    %55 = vector.broadcast %54 : vector<1x32xf32> to vector<96x32xf32>
    %56 = arith.addf %52, %55 : vector<96x32xf32>
    %cst_21 = arith.constant 0.000000e+00 : f32
    %57 = vector.broadcast %cst_21 : f32 to vector<96x32xf32>
    %58 = arith.maximumf %56, %57 : vector<96x32xf32>
    %c0_22 = arith.constant 0 : index
    %c0_23 = arith.constant 0 : index
    %c0_24 = arith.constant 0 : index
    %59 = vector.load %arg6[%c0_22, %c0_23, %c0_24] : memref<1x32x32xf32, #tpu.memory_space<vmem>>, vector<1x32x32xf32>
    %60 = vector.shape_cast %59 : vector<1x32x32xf32> to vector<32x32xf32>
    %cst_25 = arith.constant dense<0.000000e+00> : vector<96x32xf32>
    %61 = tpu.matmul %58, %60, %cst_25 {dimension_numbers = #tpu.dot_dimension_numbers<[1], [0], [0], [1], [0, 0, 1, 1], [], []>} : vector<96x32xf32>, vector<32x32xf32>, vector<96x32xf32> -> vector<96x32xf32>
    %c0_26 = arith.constant 0 : index
    %c0_27 = arith.constant 0 : index
    %c0_28 = arith.constant 0 : index
    %62 = vector.load %arg7[%c0_26, %c0_27, %c0_28] : memref<1x1x32xf32, #tpu.memory_space<vmem>>, vector<1x1x32xf32>
    %63 = vector.shape_cast %62 : vector<1x1x32xf32> to vector<1x32xf32>
    %64 = vector.broadcast %63 : vector<1x32xf32> to vector<96x32xf32>
    %65 = arith.addf %61, %64 : vector<96x32xf32>
    %cst_29 = arith.constant 0.000000e+00 : f32
    %66 = vector.broadcast %cst_29 : f32 to vector<96x32xf32>
    %67 = arith.maximumf %65, %66 : vector<96x32xf32>
    %68 = vector.extract_strided_slice %9 {offsets = [0, 0, 1], sizes = [1, 8, 1], strides = [1, 1, 1]} : vector<12x8x2xf32> to vector<1x8x1xf32>
    %69 = vector.shape_cast %68 : vector<1x8x1xf32> to vector<8x1xf32>
    %70 = vector.extract_strided_slice %9 {offsets = [1, 0, 1], sizes = [1, 8, 1], strides = [1, 1, 1]} : vector<12x8x2xf32> to vector<1x8x1xf32>
    %71 = vector.shape_cast %70 : vector<1x8x1xf32> to vector<8x1xf32>
    %72 = vector.extract_strided_slice %9 {offsets = [2, 0, 1], sizes = [1, 8, 1], strides = [1, 1, 1]} : vector<12x8x2xf32> to vector<1x8x1xf32>
    %73 = vector.shape_cast %72 : vector<1x8x1xf32> to vector<8x1xf32>
    %74 = vector.extract_strided_slice %9 {offsets = [3, 0, 1], sizes = [1, 8, 1], strides = [1, 1, 1]} : vector<12x8x2xf32> to vector<1x8x1xf32>
    %75 = vector.shape_cast %74 : vector<1x8x1xf32> to vector<8x1xf32>
    %76 = vector.extract_strided_slice %9 {offsets = [4, 0, 1], sizes = [1, 8, 1], strides = [1, 1, 1]} : vector<12x8x2xf32> to vector<1x8x1xf32>
    %77 = vector.shape_cast %76 : vector<1x8x1xf32> to vector<8x1xf32>
    %78 = vector.extract_strided_slice %9 {offsets = [5, 0, 1], sizes = [1, 8, 1], strides = [1, 1, 1]} : vector<12x8x2xf32> to vector<1x8x1xf32>
    %79 = vector.shape_cast %78 : vector<1x8x1xf32> to vector<8x1xf32>
    %80 = vector.extract_strided_slice %9 {offsets = [6, 0, 1], sizes = [1, 8, 1], strides = [1, 1, 1]} : vector<12x8x2xf32> to vector<1x8x1xf32>
    %81 = vector.shape_cast %80 : vector<1x8x1xf32> to vector<8x1xf32>
    %82 = vector.extract_strided_slice %9 {offsets = [7, 0, 1], sizes = [1, 8, 1], strides = [1, 1, 1]} : vector<12x8x2xf32> to vector<1x8x1xf32>
    %83 = vector.shape_cast %82 : vector<1x8x1xf32> to vector<8x1xf32>
    %84 = vector.extract_strided_slice %9 {offsets = [8, 0, 1], sizes = [1, 8, 1], strides = [1, 1, 1]} : vector<12x8x2xf32> to vector<1x8x1xf32>
    %85 = vector.shape_cast %84 : vector<1x8x1xf32> to vector<8x1xf32>
    %86 = vector.extract_strided_slice %9 {offsets = [9, 0, 1], sizes = [1, 8, 1], strides = [1, 1, 1]} : vector<12x8x2xf32> to vector<1x8x1xf32>
    %87 = vector.shape_cast %86 : vector<1x8x1xf32> to vector<8x1xf32>
    %88 = vector.extract_strided_slice %9 {offsets = [10, 0, 1], sizes = [1, 8, 1], strides = [1, 1, 1]} : vector<12x8x2xf32> to vector<1x8x1xf32>
    %89 = vector.shape_cast %88 : vector<1x8x1xf32> to vector<8x1xf32>
    %90 = vector.extract_strided_slice %9 {offsets = [11, 0, 1], sizes = [1, 8, 1], strides = [1, 1, 1]} : vector<12x8x2xf32> to vector<1x8x1xf32>
    %91 = vector.shape_cast %90 : vector<1x8x1xf32> to vector<8x1xf32>
    %92 = tpu.concatenate %69, %71, %73, %75, %77, %79, %81, %83, %85, %87, %89, %91 in 0 : vector<8x1xf32>, vector<8x1xf32>, vector<8x1xf32>, vector<8x1xf32>, vector<8x1xf32>, vector<8x1xf32>, vector<8x1xf32>, vector<8x1xf32>, vector<8x1xf32>, vector<8x1xf32>, vector<8x1xf32>, vector<8x1xf32> -> vector<96x1xf32>
    %93 = vector.broadcast %92 : vector<96x1xf32> to vector<96x32xf32>
    %94 = arith.mulf %67, %93 : vector<96x32xf32>
    %95 = vector.extract_strided_slice %94 {offsets = [0, 0], sizes = [8, 32], strides = [1, 1]} : vector<96x32xf32> to vector<8x32xf32>
    %96 = vector.extract_strided_slice %94 {offsets = [8, 0], sizes = [8, 32], strides = [1, 1]} : vector<96x32xf32> to vector<8x32xf32>
    %97 = arith.addf %95, %96 : vector<8x32xf32>
    %98 = vector.extract_strided_slice %94 {offsets = [16, 0], sizes = [8, 32], strides = [1, 1]} : vector<96x32xf32> to vector<8x32xf32>
    %99 = arith.addf %97, %98 : vector<8x32xf32>
    %100 = vector.extract_strided_slice %94 {offsets = [24, 0], sizes = [8, 32], strides = [1, 1]} : vector<96x32xf32> to vector<8x32xf32>
    %101 = vector.extract_strided_slice %94 {offsets = [32, 0], sizes = [8, 32], strides = [1, 1]} : vector<96x32xf32> to vector<8x32xf32>
    %102 = arith.addf %100, %101 : vector<8x32xf32>
    %103 = vector.extract_strided_slice %94 {offsets = [40, 0], sizes = [8, 32], strides = [1, 1]} : vector<96x32xf32> to vector<8x32xf32>
    %104 = arith.addf %102, %103 : vector<8x32xf32>
    %105 = vector.extract_strided_slice %94 {offsets = [48, 0], sizes = [8, 32], strides = [1, 1]} : vector<96x32xf32> to vector<8x32xf32>
    %106 = vector.extract_strided_slice %94 {offsets = [56, 0], sizes = [8, 32], strides = [1, 1]} : vector<96x32xf32> to vector<8x32xf32>
    %107 = arith.addf %105, %106 : vector<8x32xf32>
    %108 = vector.extract_strided_slice %94 {offsets = [64, 0], sizes = [8, 32], strides = [1, 1]} : vector<96x32xf32> to vector<8x32xf32>
    %109 = arith.addf %107, %108 : vector<8x32xf32>
    %110 = vector.extract_strided_slice %94 {offsets = [72, 0], sizes = [8, 32], strides = [1, 1]} : vector<96x32xf32> to vector<8x32xf32>
    %111 = vector.extract_strided_slice %94 {offsets = [80, 0], sizes = [8, 32], strides = [1, 1]} : vector<96x32xf32> to vector<8x32xf32>
    %112 = arith.addf %110, %111 : vector<8x32xf32>
    %113 = vector.extract_strided_slice %94 {offsets = [88, 0], sizes = [8, 32], strides = [1, 1]} : vector<96x32xf32> to vector<8x32xf32>
    %114 = arith.addf %112, %113 : vector<8x32xf32>
    %115 = tpu.concatenate %99, %104, %109, %114 in 0 : vector<8x32xf32>, vector<8x32xf32>, vector<8x32xf32>, vector<8x32xf32> -> vector<32x32xf32>
    %c0_30 = arith.constant 0 : index
    %c0_31 = arith.constant 0 : index
    %116 = vector.load %arg8[%c0_30, %c0_31] : memref<4x32xf32, #tpu.memory_space<vmem>>, vector<4x32xf32>
    %cst_32 = arith.constant dense<0.000000e+00> : vector<32x32xf32>
    %117 = tpu.matmul %8, %116, %cst_32 {dimension_numbers = #tpu.dot_dimension_numbers<[1], [0], [0], [1], [0, 0, 1, 1], [], []>} : vector<32x4xf32>, vector<4x32xf32>, vector<32x32xf32> -> vector<32x32xf32>
    %c0_33 = arith.constant 0 : index
    %c0_34 = arith.constant 0 : index
    %118 = vector.load %arg9[%c0_33, %c0_34] : memref<32x32xf32, #tpu.memory_space<vmem>>, vector<32x32xf32>
    %cst_35 = arith.constant dense<0.000000e+00> : vector<32x32xf32>
    %119 = tpu.matmul %115, %118, %cst_35 {dimension_numbers = #tpu.dot_dimension_numbers<[1], [0], [0], [1], [0, 0, 1, 1], [], []>} : vector<32x32xf32>, vector<32x32xf32>, vector<32x32xf32> -> vector<32x32xf32>
    %120 = arith.addf %117, %119 : vector<32x32xf32>
    %c0_36 = arith.constant 0 : index
    %c0_37 = arith.constant 0 : index
    %121 = vector.load %arg10[%c0_36, %c0_37] : memref<1x32xf32, #tpu.memory_space<vmem>>, vector<1x32xf32>
    %122 = vector.broadcast %121 : vector<1x32xf32> to vector<32x32xf32>
    %123 = arith.addf %120, %122 : vector<32x32xf32>
    %cst_38 = arith.constant 0.000000e+00 : f32
    %124 = vector.broadcast %cst_38 : f32 to vector<32x32xf32>
    %125 = arith.maximumf %123, %124 : vector<32x32xf32>
    %c0_39 = arith.constant 0 : index
    %c0_40 = arith.constant 0 : index
    %126 = vector.load %arg11[%c0_39, %c0_40] : memref<32x32xf32, #tpu.memory_space<vmem>>, vector<32x32xf32>
    %cst_41 = arith.constant dense<0.000000e+00> : vector<32x32xf32>
    %127 = tpu.matmul %125, %126, %cst_41 {dimension_numbers = #tpu.dot_dimension_numbers<[1], [0], [0], [1], [0, 0, 1, 1], [], []>} : vector<32x32xf32>, vector<32x32xf32>, vector<32x32xf32> -> vector<32x32xf32>
    %c0_42 = arith.constant 0 : index
    %c0_43 = arith.constant 0 : index
    %128 = vector.load %arg12[%c0_42, %c0_43] : memref<1x32xf32, #tpu.memory_space<vmem>>, vector<1x32xf32>
    %129 = vector.broadcast %128 : vector<1x32xf32> to vector<32x32xf32>
    %130 = arith.addf %127, %129 : vector<32x32xf32>
    %cst_44 = arith.constant 0.000000e+00 : f32
    %131 = vector.broadcast %cst_44 : f32 to vector<32x32xf32>
    %132 = arith.maximumf %130, %131 : vector<32x32xf32>
    %c0_45 = arith.constant 0 : index
    %c0_46 = arith.constant 0 : index
    %133 = vector.load %arg13[%c0_45, %c0_46] : memref<32x4xf32, #tpu.memory_space<vmem>>, vector<32x4xf32>
    %cst_47 = arith.constant dense<0.000000e+00> : vector<32x4xf32>
    %134 = tpu.matmul %132, %133, %cst_47 {dimension_numbers = #tpu.dot_dimension_numbers<[1], [0], [0], [1], [0, 0, 1, 1], [], []>} : vector<32x32xf32>, vector<32x4xf32>, vector<32x4xf32> -> vector<32x4xf32>
    %c0_48 = arith.constant 0 : index
    %c0_49 = arith.constant 0 : index
    %135 = vector.load %arg14[%c0_48, %c0_49] : memref<1x4xf32, #tpu.memory_space<vmem>>, vector<1x4xf32>
    %136 = vector.broadcast %135 : vector<1x4xf32> to vector<32x4xf32>
    %137 = arith.addf %134, %136 : vector<32x4xf32>
    %138 = arith.addf %8, %137 : vector<32x4xf32>
    %139 = vector.extract_strided_slice %138 {offsets = [0, 0], sizes = [8, 4], strides = [1, 1]} : vector<32x4xf32> to vector<8x4xf32>
    %140 = vector.extract_strided_slice %138 {offsets = [8, 0], sizes = [8, 4], strides = [1, 1]} : vector<32x4xf32> to vector<8x4xf32>
    %141 = vector.extract_strided_slice %138 {offsets = [16, 0], sizes = [8, 4], strides = [1, 1]} : vector<32x4xf32> to vector<8x4xf32>
    %142 = vector.extract_strided_slice %138 {offsets = [24, 0], sizes = [8, 4], strides = [1, 1]} : vector<32x4xf32> to vector<8x4xf32>
    %143 = tpu.concatenate %139, %140, %141, %142 in 1 : vector<8x4xf32>, vector<8x4xf32>, vector<8x4xf32>, vector<8x4xf32> -> vector<8x16xf32>
    %c0_50 = arith.constant 0 : index
    %c0_51 = arith.constant 0 : index
    %144 = vector.load %arg15[%c0_50, %c0_51] : memref<8x16xf32, #tpu.memory_space<vmem>>, vector<8x16xf32>
    tpu.vector_store %arg15[%c0_50, %c0_51], %143 {strides = array<i32>} : memref<8x16xf32, #tpu.memory_space<vmem>>, vector<8x16xf32>,
    return
  }
  func.func @transform_0(%arg0: i32) -> (i32, i32, i32) {
    %c0_i32 = arith.constant 0 : i32
    %c0_i32_0 = arith.constant 0 : i32
    %c0_i32_1 = arith.constant 0 : i32
    return %c0_i32, %arg0, %c0_i32_0 : i32, i32, i32
  }
  func.func @transform_1(%arg0: i32) -> (i32, i32, i32) {
    %c0_i32 = arith.constant 0 : i32
    %c0_i32_0 = arith.constant 0 : i32
    %c0_i32_1 = arith.constant 0 : i32
    return %c0_i32, %arg0, %c0_i32_0 : i32, i32, i32
  }
  func.func @transform_2(%arg0: i32) -> (i32, i32, i32) {
    %c0_i32 = arith.constant 0 : i32
    %c0_i32_0 = arith.constant 0 : i32
    %c0_i32_1 = arith.constant 0 : i32
    %c0_i32_2 = arith.constant 0 : i32
    return %c0_i32, %c0_i32_0, %c0_i32_1 : i32, i32, i32
  }
  func.func @transform_3(%arg0: i32) -> (i32, i32, i32) {
    %c0_i32 = arith.constant 0 : i32
    %c0_i32_0 = arith.constant 0 : i32
    %c0_i32_1 = arith.constant 0 : i32
    %c0_i32_2 = arith.constant 0 : i32
    return %c0_i32, %c0_i32_0, %c0_i32_1 : i32, i32, i32
  }
  func.func @transform_4(%arg0: i32) -> (i32, i32, i32) {
    %c0_i32 = arith.constant 0 : i32
    %c0_i32_0 = arith.constant 0 : i32
    %c0_i32_1 = arith.constant 0 : i32
    %c0_i32_2 = arith.constant 0 : i32
    return %c0_i32, %c0_i32_0, %c0_i32_1 : i32, i32, i32
  }
  func.func @transform_5(%arg0: i32) -> (i32, i32, i32) {
    %c0_i32 = arith.constant 0 : i32
    %c0_i32_0 = arith.constant 0 : i32
    %c0_i32_1 = arith.constant 0 : i32
    %c0_i32_2 = arith.constant 0 : i32
    return %c0_i32, %c0_i32_0, %c0_i32_1 : i32, i32, i32
  }
  func.func @transform_6(%arg0: i32) -> (i32, i32, i32) {
    %c0_i32 = arith.constant 0 : i32
    %c0_i32_0 = arith.constant 0 : i32
    %c0_i32_1 = arith.constant 0 : i32
    %c0_i32_2 = arith.constant 0 : i32
    return %c0_i32, %c0_i32_0, %c0_i32_1 : i32, i32, i32
  }
  func.func @transform_7(%arg0: i32) -> (i32, i32) {
    %c0_i32 = arith.constant 0 : i32
    %c0_i32_0 = arith.constant 0 : i32
    %c0_i32_1 = arith.constant 0 : i32
    return %c0_i32, %c0_i32_0 : i32, i32
  }
  func.func @transform_8(%arg0: i32) -> (i32, i32) {
    %c0_i32 = arith.constant 0 : i32
    %c0_i32_0 = arith.constant 0 : i32
    %c0_i32_1 = arith.constant 0 : i32
    return %c0_i32, %c0_i32_0 : i32, i32
  }
  func.func @transform_9(%arg0: i32) -> (i32, i32) {
    %c0_i32 = arith.constant 0 : i32
    %c0_i32_0 = arith.constant 0 : i32
    %c0_i32_1 = arith.constant 0 : i32
    return %c0_i32, %c0_i32_0 : i32, i32
  }
  func.func @transform_10(%arg0: i32) -> (i32, i32) {
    %c0_i32 = arith.constant 0 : i32
    %c0_i32_0 = arith.constant 0 : i32
    %c0_i32_1 = arith.constant 0 : i32
    return %c0_i32, %c0_i32_0 : i32, i32
  }
  func.func @transform_11(%arg0: i32) -> (i32, i32) {
    %c0_i32 = arith.constant 0 : i32
    %c0_i32_0 = arith.constant 0 : i32
    %c0_i32_1 = arith.constant 0 : i32
    return %c0_i32, %c0_i32_0 : i32, i32
  }
  func.func @transform_12(%arg0: i32) -> (i32, i32) {
    %c0_i32 = arith.constant 0 : i32
    %c0_i32_0 = arith.constant 0 : i32
    %c0_i32_1 = arith.constant 0 : i32
    return %c0_i32, %c0_i32_0 : i32, i32
  }
  func.func @transform_13(%arg0: i32) -> (i32, i32) {
    %c0_i32 = arith.constant 0 : i32
    %c0_i32_0 = arith.constant 0 : i32
    %c0_i32_1 = arith.constant 0 : i32
    return %c0_i32, %c0_i32_0 : i32, i32
  }
  func.func @transform_14(%arg0: i32) -> (i32, i32) {
    %c0_i32 = arith.constant 0 : i32
    %c0_i32_0 = arith.constant 0 : i32
    return %arg0, %c0_i32 : i32, i32
  }
}

</mosaic_0001>

<llo_original>
// kernel: tpu_custom_call.1
$region0: #{tpu_custom_call.1}
  #allocation0 [shape = 'u32[]', space=smem, size = 0x4, offset = 0x4, fixed_abs, tag = 'smem constant byte address 0x4 - core index']
  #allocation1 [shape = 'u32[144,128]{1,0:T(1,128)}', space=vmem, size = 0x12000, scoped, tag = 'internal scratch']
  %s0 = inlined_call_operand.vmem [shape: f32[4,16,4], index: 0, kind: input, shape index: {}]
  %s1 = inlined_call_operand.vmem [shape: f32[12,16,2], index: 1, kind: input, shape index: {}]
  %s2 = inlined_call_operand.vmem [shape: f32[1,4,32], index: 2, kind: input, shape index: {}]
  %s3 = inlined_call_operand.vmem [shape: f32[1,4,32], index: 3, kind: input, shape index: {}]
  %s4 = inlined_call_operand.vmem [shape: f32[1,1,32], index: 4, kind: input, shape index: {}]
  %s5 = inlined_call_operand.vmem [shape: f32[1,32,32], index: 5, kind: input, shape index: {}]
  %s6 = inlined_call_operand.vmem [shape: f32[1,1,32], index: 6, kind: input, shape index: {}]
  %s7 = inlined_call_operand.vmem [shape: f32[4,32], index: 7, kind: input, shape index: {}]
  %s8 = inlined_call_operand.vmem [shape: f32[32,32], index: 8, kind: input, shape index: {}]
  %s9 = inlined_call_operand.vmem [shape: f32[1,32], index: 9, kind: input, shape index: {}]
  %s10 = inlined_call_operand.vmem [shape: f32[32,32], index: 10, kind: input, shape index: {}]
  %s11 = inlined_call_operand.vmem [shape: f32[1,32], index: 11, kind: input, shape index: {}]
  %s12 = inlined_call_operand.vmem [shape: f32[32,4], index: 12, kind: input, shape index: {}]
  %s13 = inlined_call_operand.vmem [shape: f32[1,4], index: 13, kind: input, shape index: {}]
  %s14 = inlined_call_operand.hbm [shape: f32[16,16], index: 14, kind: output, shape index: {}]
  %s15 = sld [smem:[#allocation0]]
  $region165: #{tpu_custom_call.1} parent=0
    _
  %s17 = ssub.s32 1, %s15
  %s18 = scalar_select 0, %s17, %s15
  $region1: #{tpu_custom_call.1} parent=0
    #allocation2 [shape = 'u8[32768]{0}', space=vmem, size = 0x8000, scoped, tag = 'input window, operand 0']
    #allocation3 [shape = 'u8[98304]{0}', space=vmem, size = 0x18000, scoped, tag = 'input window, operand 1']
    #allocation4 [shape = 'u8[8192]{0}', space=vmem, size = 0x2000, scoped, tag = 'output window, operand 0']
    #allocation5 [shape = 's32[2]{0}', space=sflag, size = 0x8, scoped, tag = 'scoped memory for tpu_custom_call.1']
    %19 = vsyncpa [#allocation5], 0
    %s20 = scalar_lea.sflag [#allocation5], 1
    %21 = vsyncpa %s20, 0
    loop: start=0, step=1, limit=4
    $region2: #{tpu_custom_call.1} parent=1 // loop_pre_header
      _
    $region3: #{tpu_custom_call.1} parent=1 // loop_header
      %s23 = sphi 0, %s27
      %p24 = scmp.ge.s32.totalorder %s23, 4
      %s33 = sphi 0, %s35
      %s36 = sphi 0, %s33
      %s37 = sphi 0, %s36
      %s53 = sphi 0, %s37
      %s59 = sphi 0, %s61
      %s62 = sphi 0, %s59
      %s63 = sphi 0, %s62
      %s79 = sphi 0, %s63
      %s83 = sphi 0, %s83
      %s85 = sphi 0, %s83
      %s86 = sphi 0, %s85
      %s100 = sphi 0, %s86
      %s104 = sphi 0, %s104
      %s106 = sphi 0, %s104
      %s107 = sphi 0, %s106
      %s121 = sphi 0, %s107
      %s125 = sphi 0, %s125
      %s127 = sphi 0, %s125
      %s128 = sphi 0, %s127
      %s142 = sphi 0, %s128
      %s146 = sphi 0, %s146
      %s148 = sphi 0, %s146
      %s149 = sphi 0, %s148
      %s163 = sphi 0, %s149
      %s167 = sphi 0, %s167
      %s169 = sphi 0, %s167
      %s170 = sphi 0, %s169
      %s184 = sphi 0, %s170
      %s188 = sphi 0, %s188
      %s190 = sphi 0, %s188
      %s191 = sphi 0, %s190
      %s205 = sphi 0, %s191
      %s209 = sphi 0, %s209
      %s211 = sphi 0, %s209
      %s212 = sphi 0, %s211
      %s226 = sphi 0, %s212
      %s230 = sphi 0, %s230
      %s232 = sphi 0, %s230
      %s233 = sphi 0, %s232
      %s247 = sphi 0, %s233
      %s251 = sphi 0, %s251
      %s253 = sphi 0, %s251
      %s254 = sphi 0, %s253
      %s268 = sphi 0, %s254
      %s272 = sphi 0, %s272
      %s274 = sphi 0, %s272
      %s275 = sphi 0, %s274
      %s289 = sphi 0, %s275
      %s293 = sphi 0, %s293
      %s295 = sphi 0, %s293
      %s296 = sphi 0, %s295
      %s310 = sphi 0, %s296
      %s314 = sphi 0, %s314
      %s316 = sphi 0, %s314
      %s317 = sphi 0, %s316
      %s331 = sphi 0, %s317
      %s337 = sphi 0, %s339
      %s340 = sphi 0, %s337
      %s341 = sphi 0, %s340
      %s357 = sphi 0, %s341
    $region4: #{tpu_custom_call.1} parent=1 // loop_header_branch
      %26 = sbr.rel (%p24) target = $region8
    $region5: #{tpu_custom_call.1} parent=1 // loop_body
      %s28 = ssub.s32 %s23, 1
      %s29 = ssub.s32 %s23, 2
      %s30 = sadd.s32 %s23, 1
      %s31 = ssub.s32 %s23, %s30
      %p32 = scmp.eq.s32.totalorder %s31, 0
      %s34 = sadd.s32 %s33, 1
      %s35 = scalar_select %p32, %s33, %s34
      %p38 = pneg %p32
      %p39 = scmp.eq.s32.totalorder %s23, 1
      %p40 = por %p38, %p39
      %p41 = scmp.ne.s32.totalorder %s33, %s36
      %p42 = scmp.eq.s32.totalorder %s23, 0
      %p43 = por %p41, %p42
      %p44 = scmp.ne.s32.totalorder %s33, %s36
      %p45 = scmp.eq.s32.totalorder %s28, 1
      %p46 = por %p44, %p45
      %p47 = scmp.ne.s32.totalorder %s36, %s37
      %p48 = scmp.eq.s32.totalorder %s28, 0
      %p49 = por %p47, %p48
      %p50 = scmp.ne.s32.totalorder %s36, %s37
      %p51 = scmp.eq.s32.totalorder %s29, 1
      %p52 = por %p50, %p51
      %p54 = scmp.ne.s32.totalorder %s37, %s53
      %p55 = scmp.eq.s32.totalorder %s29, 0
      %p56 = por %p54, %p55
      %s57 = ssub.s32 %s23, %s30
      %p58 = scmp.eq.s32.totalorder %s57, 0
      %s60 = sadd.s32 %s59, 1
      %s61 = scalar_select %p58, %s59, %s60
      %p64 = pneg %p58
      %p65 = scmp.eq.s32.totalorder %s23, 1
      %p66 = por %p64, %p65
      %p67 = scmp.ne.s32.totalorder %s59, %s62
      %p68 = scmp.eq.s32.totalorder %s23, 0
      %p69 = por %p67, %p68
      %p70 = scmp.ne.s32.totalorder %s59, %s62
      %p71 = scmp.eq.s32.totalorder %s28, 1
      %p72 = por %p70, %p71
      %p73 = scmp.ne.s32.totalorder %s62, %s63
      %p74 = scmp.eq.s32.totalorder %s28, 0
      %p75 = por %p73, %p74
      %p76 = scmp.ne.s32.totalorder %s62, %s63
      %p77 = scmp.eq.s32.totalorder %s29, 1
      %p78 = por %p76, %p77
      %p80 = scmp.ne.s32.totalorder %s63, %s79
      %p81 = scmp.eq.s32.totalorder %s29, 0
      %p82 = por %p80, %p81
      %s84 = sadd.s32 %s83, 1
      %p87 = scmp.eq.s32.totalorder %s23, 1
      %p88 = scmp.ne.s32.totalorder %s83, %s85
      %p89 = scmp.eq.s32.totalorder %s23, 0
      %p90 = por %p88, %p89
      %p91 = scmp.ne.s32.totalorder %s83, %s85
      %p92 = scmp.eq.s32.totalorder %s28, 1
      %p93 = por %p91, %p92
      %p94 = scmp.ne.s32.totalorder %s85, %s86
      %p95 = scmp.eq.s32.totalorder %s28, 0
      %p96 = por %p94, %p95
      %p97 = scmp.ne.s32.totalorder %s85, %s86
      %p98 = scmp.eq.s32.totalorder %s29, 1
      %p99 = por %p97, %p98
      %p101 = scmp.ne.s32.totalorder %s86, %s100
      %p102 = scmp.eq.s32.totalorder %s29, 0
      %p103 = por %p101, %p102
      %s105 = sadd.s32 %s104, 1
      %p108 = scmp.eq.s32.totalorder %s23, 1
      %p109 = scmp.ne.s32.totalorder %s104, %s106
      %p110 = scmp.eq.s32.totalorder %s23, 0
      %p111 = por %p109, %p110
      %p112 = scmp.ne.s32.totalorder %s104, %s106
      %p113 = scmp.eq.s32.totalorder %s28, 1
      %p114 = por %p112, %p113
      %p115 = scmp.ne.s32.totalorder %s106, %s107
      %p116 = scmp.eq.s32.totalorder %s28, 0
      %p117 = por %p115, %p116
      %p118 = scmp.ne.s32.totalorder %s106, %s107
      %p119 = scmp.eq.s32.totalorder %s29, 1
      %p120 = por %p118, %p119
      %p122 = scmp.ne.s32.totalorder %s107, %s121
      %p123 = scmp.eq.s32.totalorder %s29, 0
      %p124 = por %p122, %p123
      %s126 = sadd.s32 %s125, 1
      %p129 = scmp.eq.s32.totalorder %s23, 1
      %p130 = scmp.ne.s32.totalorder %s125, %s127
      %p131 = scmp.eq.s32.totalorder %s23, 0
      %p132 = por %p130, %p131
      %p133 = scmp.ne.s32.totalorder %s125, %s127
      %p134 = scmp.eq.s32.totalorder %s28, 1
      %p135 = por %p133, %p134
      %p136 = scmp.ne.s32.totalorder %s127, %s128
      %p137 = scmp.eq.s32.totalorder %s28, 0
      %p138 = por %p136, %p137
      %p139 = scmp.ne.s32.totalorder %s127, %s128
      %p140 = scmp.eq.s32.totalorder %s29, 1
      %p141 = por %p139, %p140
      %p143 = scmp.ne.s32.totalorder %s128, %s142
      %p144 = scmp.eq.s32.totalorder %s29, 0
      %p145 = por %p143, %p144
      %s147 = sadd.s32 %s146, 1
      %p150 = scmp.eq.s32.totalorder %s23, 1
      %p151 = scmp.ne.s32.totalorder %s146, %s148
      %p152 = scmp.eq.s32.totalorder %s23, 0
      %p153 = por %p151, %p152
      %p154 = scmp.ne.s32.totalorder %s146, %s148
      %p155 = scmp.eq.s32.totalorder %s28, 1
      %p156 = por %p154, %p155
      %p157 = scmp.ne.s32.totalorder %s148, %s149
      %p158 = scmp.eq.s32.totalorder %s28, 0
      %p159 = por %p157, %p158
      %p160 = scmp.ne.s32.totalorder %s148, %s149
      %p161 = scmp.eq.s32.totalorder %s29, 1
      %p162 = por %p160, %p161
      %p164 = scmp.ne.s32.totalorder %s149, %s163
      %p165 = scmp.eq.s32.totalorder %s29, 0
      %p166 = por %p164, %p165
      %s168 = sadd.s32 %s167, 1
      %p171 = scmp.eq.s32.totalorder %s23, 1
      %p172 = scmp.ne.s32.totalorder %s167, %s169
      %p173 = scmp.eq.s32.totalorder %s23, 0
      %p174 = por %p172, %p173
      %p175 = scmp.ne.s32.totalorder %s167, %s169
      %p176 = scmp.eq.s32.totalorder %s28, 1
      %p177 = por %p175, %p176
      %p178 = scmp.ne.s32.totalorder %s169, %s170
      %p179 = scmp.eq.s32.totalorder %s28, 0
      %p180 = por %p178, %p179
      %p181 = scmp.ne.s32.totalorder %s169, %s170
      %p182 = scmp.eq.s32.totalorder %s29, 1
      %p183 = por %p181, %p182
      %p185 = scmp.ne.s32.totalorder %s170, %s184
      %p186 = scmp.eq.s32.totalorder %s29, 0
      %p187 = por %p185, %p186
      %s189 = sadd.s32 %s188, 1
      %p192 = scmp.eq.s32.totalorder %s23, 1
      %p193 = scmp.ne.s32.totalorder %s188, %s190
      %p194 = scmp.eq.s32.totalorder %s23, 0
      %p195 = por %p193, %p194
      %p196 = scmp.ne.s32.totalorder %s188, %s190
      %p197 = scmp.eq.s32.totalorder %s28, 1
      %p198 = por %p196, %p197
      %p199 = scmp.ne.s32.totalorder %s190, %s191
      %p200 = scmp.eq.s32.totalorder %s28, 0
      %p201 = por %p199, %p200
      %p202 = scmp.ne.s32.totalorder %s190, %s191
      %p203 = scmp.eq.s32.totalorder %s29, 1
      %p204 = por %p202, %p203
      %p206 = scmp.ne.s32.totalorder %s191, %s205
      %p207 = scmp.eq.s32.totalorder %s29, 0
      %p208 = por %p206, %p207
      %s210 = sadd.s32 %s209, 1
      %p213 = scmp.eq.s32.totalorder %s23, 1
      %p214 = scmp.ne.s32.totalorder %s209, %s211
      %p215 = scmp.eq.s32.totalorder %s23, 0
      %p216 = por %p214, %p215
      %p217 = scmp.ne.s32.totalorder %s209, %s211
      %p218 = scmp.eq.s32.totalorder %s28, 1
      %p219 = por %p217, %p218
      %p220 = scmp.ne.s32.totalorder %s211, %s212
      %p221 = scmp.eq.s32.totalorder %s28, 0
      %p222 = por %p220, %p221
      %p223 = scmp.ne.s32.totalorder %s211, %s212
      %p224 = scmp.eq.s32.totalorder %s29, 1
      %p225 = por %p223, %p224
      %p227 = scmp.ne.s32.totalorder %s212, %s226
      %p228 = scmp.eq.s32.totalorder %s29, 0
      %p229 = por %p227, %p228
      %s231 = sadd.s32 %s230, 1
      %p234 = scmp.eq.s32.totalorder %s23, 1
      %p235 = scmp.ne.s32.totalorder %s230, %s232
      %p236 = scmp.eq.s32.totalorder %s23, 0
      %p237 = por %p235, %p236
      %p238 = scmp.ne.s32.totalorder %s230, %s232
      %p239 = scmp.eq.s32.totalorder %s28, 1
      %p240 = por %p238, %p239
      %p241 = scmp.ne.s32.totalorder %s232, %s233
      %p242 = scmp.eq.s32.totalorder %s28, 0
      %p243 = por %p241, %p242
      %p244 = scmp.ne.s32.totalorder %s232, %s233
      %p245 = scmp.eq.s32.totalorder %s29, 1
      %p246 = por %p244, %p245
      %p248 = scmp.ne.s32.totalorder %s233, %s247
      %p249 = scmp.eq.s32.totalorder %s29, 0
      %p250 = por %p248, %p249
      %s252 = sadd.s32 %s251, 1
      %p255 = scmp.eq.s32.totalorder %s23, 1
      %p256 = scmp.ne.s32.totalorder %s251, %s253
      %p257 = scmp.eq.s32.totalorder %s23, 0
      %p258 = por %p256, %p257
      %p259 = scmp.ne.s32.totalorder %s251, %s253
      %p260 = scmp.eq.s32.totalorder %s28, 1
      %p261 = por %p259, %p260
      %p262 = scmp.ne.s32.totalorder %s253, %s254
      %p263 = scmp.eq.s32.totalorder %s28, 0
      %p264 = por %p262, %p263
      %p265 = scmp.ne.s32.totalorder %s253, %s254
      %p266 = scmp.eq.s32.totalorder %s29, 1
      %p267 = por %p265, %p266
      %p269 = scmp.ne.s32.totalorder %s254, %s268
      %p270 = scmp.eq.s32.totalorder %s29, 0
      %p271 = por %p269, %p270
      %s273 = sadd.s32 %s272, 1
      %p276 = scmp.eq.s32.totalorder %s23, 1
      %p277 = scmp.ne.s32.totalorder %s272, %s274
      %p278 = scmp.eq.s32.totalorder %s23, 0
      %p279 = por %p277, %p278
      %p280 = scmp.ne.s32.totalorder %s272, %s274
      %p281 = scmp.eq.s32.totalorder %s28, 1
      %p282 = por %p280, %p281
      %p283 = scmp.ne.s32.totalorder %s274, %s275
      %p284 = scmp.eq.s32.totalorder %s28, 0
      %p285 = por %p283, %p284
      %p286 = scmp.ne.s32.totalorder %s274, %s275
      %p287 = scmp.eq.s32.totalorder %s29, 1
      %p288 = por %p286, %p287
      %p290 = scmp.ne.s32.totalorder %s275, %s289
      %p291 = scmp.eq.s32.totalorder %s29, 0
      %p292 = por %p290, %p291
      %s294 = sadd.s32 %s293, 1
      %p297 = scmp.eq.s32.totalorder %s23, 1
      %p298 = scmp.ne.s32.totalorder %s293, %s295
      %p299 = scmp.eq.s32.totalorder %s23, 0
      %p300 = por %p298, %p299
      %p301 = scmp.ne.s32.totalorder %s293, %s295
      %p302 = scmp.eq.s32.totalorder %s28, 1
      %p303 = por %p301, %p302
      %p304 = scmp.ne.s32.totalorder %s295, %s296
      %p305 = scmp.eq.s32.totalorder %s28, 0
      %p306 = por %p304, %p305
      %p307 = scmp.ne.s32.totalorder %s295, %s296
      %p308 = scmp.eq.s32.totalorder %s29, 1
      %p309 = por %p307, %p308
      %p311 = scmp.ne.s32.totalorder %s296, %s310
      %p312 = scmp.eq.s32.totalorder %s29, 0
      %p313 = por %p311, %p312
      %s315 = sadd.s32 %s314, 1
      %p318 = scmp.eq.s32.totalorder %s23, 1
      %p319 = scmp.ne.s32.totalorder %s314, %s316
      %p320 = scmp.eq.s32.totalorder %s23, 0
      %p321 = por %p319, %p320
      %p322 = scmp.ne.s32.totalorder %s314, %s316
      %p323 = scmp.eq.s32.totalorder %s28, 1
      %p324 = por %p322, %p323
      %p325 = scmp.ne.s32.totalorder %s316, %s317
      %p326 = scmp.eq.s32.totalorder %s28, 0
      %p327 = por %p325, %p326
      %p328 = scmp.ne.s32.totalorder %s316, %s317
      %p329 = scmp.eq.s32.totalorder %s29, 1
      %p330 = por %p328, %p329
      %p332 = scmp.ne.s32.totalorder %s317, %s331
      %p333 = scmp.eq.s32.totalorder %s29, 0
      %p334 = por %p332, %p333
      %s335 = ssub.s32 %s23, %s30
      %p336 = scmp.eq.s32.totalorder %s335, 0
      %s338 = sadd.s32 %s337, 1
      %s339 = scalar_select %p336, %s337, %s338
      %p342 = pneg %p336
      %p343 = scmp.eq.s32.totalorder %s23, 1
      %p344 = por %p342, %p343
      %p345 = scmp.ne.s32.totalorder %s337, %s340
      %p346 = scmp.eq.s32.totalorder %s23, 0
      %p347 = por %p345, %p346
      %p348 = scmp.ne.s32.totalorder %s337, %s340
      %p349 = scmp.eq.s32.totalorder %s28, 1
      %p350 = por %p348, %p349
      %p351 = scmp.ne.s32.totalorder %s340, %s341
      %p352 = scmp.eq.s32.totalorder %s28, 0
      %p353 = por %p351, %p352
      %p354 = scmp.ne.s32.totalorder %s340, %s341
      %p355 = scmp.eq.s32.totalorder %s29, 1
      %p356 = por %p354, %p355
      %p358 = scmp.ne.s32.totalorder %s341, %s357
      %p359 = scmp.eq.s32.totalorder %s29, 0
      %p360 = por %p358, %p359
      %p361 = scmp.le.s32.totalorder 1, %s23
      %p362 = scmp.lt.s32.totalorder %s23, 3
      %p363 = pnand %p361, %p362
      %p364 = pneg %p363
      // Predicated region
      $region9: #{tpu_custom_call.1} parent=5 // pred_check
        _
      $region10: #{tpu_custom_call.1} parent=5 // pred_check_branch
        %366 = sbr.rel (%p363) target = $region12
      $region11: #{tpu_custom_call.1} parent=5 // pred_region
        %s367 = ssub.s32 %s23, 1
        // Predicated region
        $region13: #{tpu_custom_call.1} parent=11 // pred_check
          %p368 = pneg %p96
        $region14: #{tpu_custom_call.1} parent=11 // pred_check_branch
          %370 = sbr.rel (%p368) target = $region16
        $region15: #{tpu_custom_call.1} parent=11 // pred_region
          _
        $region16: #{tpu_custom_call.1} parent=11 // pred_fallthru
          _
        // Predicated region
        $region17: #{tpu_custom_call.1} parent=11 // pred_check
          %p371 = pneg %p117
        $region18: #{tpu_custom_call.1} parent=11 // pred_check_branch
          %373 = sbr.rel (%p371) target = $region20
        $region19: #{tpu_custom_call.1} parent=11 // pred_region
          _
        $region20: #{tpu_custom_call.1} parent=11 // pred_fallthru
          _
        // Predicated region
        $region21: #{tpu_custom_call.1} parent=11 // pred_check
          %p374 = pneg %p138
        $region22: #{tpu_custom_call.1} parent=11 // pred_check_branch
          %376 = sbr.rel (%p374) target = $region24
        $region23: #{tpu_custom_call.1} parent=11 // pred_region
          _
        $region24: #{tpu_custom_call.1} parent=11 // pred_fallthru
          _
        // Predicated region
        $region25: #{tpu_custom_call.1} parent=11 // pred_check
          %p377 = pneg %p159
        $region26: #{tpu_custom_call.1} parent=11 // pred_check_branch
          %379 = sbr.rel (%p377) target = $region28
        $region27: #{tpu_custom_call.1} parent=11 // pred_region
          _
        $region28: #{tpu_custom_call.1} parent=11 // pred_fallthru
          _
        // Predicated region
        $region29: #{tpu_custom_call.1} parent=11 // pred_check
          %p380 = pneg %p180
        $region30: #{tpu_custom_call.1} parent=11 // pred_check_branch
          %382 = sbr.rel (%p380) target = $region32
        $region31: #{tpu_custom_call.1} parent=11 // pred_region
          _
        $region32: #{tpu_custom_call.1} parent=11 // pred_fallthru
          _
        // Predicated region
        $region33: #{tpu_custom_call.1} parent=11 // pred_check
          %p383 = pneg %p201
        $region34: #{tpu_custom_call.1} parent=11 // pred_check_branch
          %385 = sbr.rel (%p383) target = $region36
        $region35: #{tpu_custom_call.1} parent=11 // pred_region
          _
        $region36: #{tpu_custom_call.1} parent=11 // pred_fallthru
          _
        // Predicated region
        $region37: #{tpu_custom_call.1} parent=11 // pred_check
          %p386 = pneg %p222
        $region38: #{tpu_custom_call.1} parent=11 // pred_check_branch
          %388 = sbr.rel (%p386) target = $region40
        $region39: #{tpu_custom_call.1} parent=11 // pred_region
          _
        $region40: #{tpu_custom_call.1} parent=11 // pred_fallthru
          _
        // Predicated region
        $region41: #{tpu_custom_call.1} parent=11 // pred_check
          %p389 = pneg %p243
        $region42: #{tpu_custom_call.1} parent=11 // pred_check_branch
          %391 = sbr.rel (%p389) target = $region44
        $region43: #{tpu_custom_call.1} parent=11 // pred_region
          _
        $region44: #{tpu_custom_call.1} parent=11 // pred_fallthru
          _
        // Predicated region
        $region45: #{tpu_custom_call.1} parent=11 // pred_check
          %p392 = pneg %p264
        $region46: #{tpu_custom_call.1} parent=11 // pred_check_branch
          %394 = sbr.rel (%p392) target = $region48
        $region47: #{tpu_custom_call.1} parent=11 // pred_region
          _
        $region48: #{tpu_custom_call.1} parent=11 // pred_fallthru
          _
        // Predicated region
        $region49: #{tpu_custom_call.1} parent=11 // pred_check
          %p395 = pneg %p285
        $region50: #{tpu_custom_call.1} parent=11 // pred_check_branch
          %397 = sbr.rel (%p395) target = $region52
        $region51: #{tpu_custom_call.1} parent=11 // pred_region
          _
        $region52: #{tpu_custom_call.1} parent=11 // pred_fallthru
          _
        // Predicated region
        $region53: #{tpu_custom_call.1} parent=11 // pred_check
          %p398 = pneg %p306
        $region54: #{tpu_custom_call.1} parent=11 // pred_check_branch
          %400 = sbr.rel (%p398) target = $region56
        $region55: #{tpu_custom_call.1} parent=11 // pred_region
          _
        $region56: #{tpu_custom_call.1} parent=11 // pred_fallthru
          _
        // Predicated region
        $region57: #{tpu_custom_call.1} parent=11 // pred_check
          %p401 = pneg %p327
        $region58: #{tpu_custom_call.1} parent=11 // pred_check_branch
          %403 = sbr.rel (%p401) target = $region60
        $region59: #{tpu_custom_call.1} parent=11 // pred_region
          _
        $region60: #{tpu_custom_call.1} parent=11 // pred_fallthru
          _
      $region12: #{tpu_custom_call.1} parent=5 // pred_fallthru
        _
      %p404 = scmp.lt.s32.totalorder %s23, 2
      // Predicated region
      $region61: #{tpu_custom_call.1} parent=5 // pred_check
        %p405 = pneg %p404
      $region62: #{tpu_custom_call.1} parent=5 // pred_check_branch
        %407 = sbr.rel (%p405) target = $region64
      $region63: #{tpu_custom_call.1} parent=5 // pred_region
        // Predicated region
        $region65: #{tpu_custom_call.1} parent=63 // pred_check
          %p408 = pneg %p43
        $region66: #{tpu_custom_call.1} parent=63 // pred_check_branch
          %410 = sbr.rel (%p408) target = $region68
        $region67: #{tpu_custom_call.1} parent=63 // pred_region
          %s411 = sand.u32 %s33, 1
          %s412 = sand.u32 %s33, 1
          %s413 = smul.addr %s412, 32
          %s414 = scalar_lea.vmem [#allocation2], %s413
          %s415 = smul.addr %s23, 8
          %s416 = scalar_lea.vmem %s0, %s415
          // Predicated region
          $region69: #{tpu_custom_call.1} parent=67 // pred_check
            _
          $region70: #{tpu_custom_call.1} parent=67 // pred_check_branch
            %418 = sbr.rel (0) target = $region72
          $region71: #{tpu_custom_call.1} parent=67 // pred_region
            // Predicated region
            $region73: #{tpu_custom_call.1} parent=71 // pred_check
              _
            $region74: #{tpu_custom_call.1} parent=71 // pred_check_branch
              %420 = sbr.rel (0) target = $region76
            $region75: #{tpu_custom_call.1} parent=71 // pred_region
              // Predicated region
              $region88: #{tpu_custom_call.1} parent=75 // pred_check
                _
              $region89: #{tpu_custom_call.1} parent=75 // pred_check_branch
                %441 = sbr.rel (0) target = $region91
              $region90: #{tpu_custom_call.1} parent=75 // pred_region
                loop: start=0, step=1, limit=1
                $region92: #{tpu_custom_call.1} parent=90 // loop_pre_header
                  _
                $region93: #{tpu_custom_call.1} parent=90 // loop_header
                  %s443 = sphi 0, %s447
                  %p444 = scmp.ge.s32.totalorder %s443, 1
                  %s448 = sphi %s416, %s416
                  %s449 = sphi %s414, %s414
                $region94: #{tpu_custom_call.1} parent=90 // loop_header_branch
                  %446 = sbr.rel (%p444) target = $region98
                $region95: #{tpu_custom_call.1} parent=90 // loop_body
                  %v450 = vld [vmem:[%s448] sm:$0xff]
                  %451 = vst [vmem:[%s449] sm:$0xff] %v450
                  %v452 = vld [vmem:[%s448 + $0x10] sm:$0xff]
                  %453 = vst [vmem:[%s449 + $0x8] sm:$0xff] %v452
                  %v454 = vld [vmem:[%s448 + $0x20] sm:$0xff]
                  %455 = vst [vmem:[%s449 + $0x10] sm:$0xff] %v454
                  %v456 = vld [vmem:[%s448 + $0x30] sm:$0xff]
                  %457 = vst [vmem:[%s449 + $0x18] sm:$0xff] %v456
                $region96: #{tpu_custom_call.1} parent=90 // loop_footer
                  %s447 = sadd.s32 1, %s443
                $region97: #{tpu_custom_call.1} parent=90 // loop_footer_branch
                  %442 = sbr.rel target = $region93
                $region98: #{tpu_custom_call.1} parent=90 // loop_exit
                  _
              $region91: #{tpu_custom_call.1} parent=75 // pred_fallthru
                _
              // Predicated region
              $region99: #{tpu_custom_call.1} parent=75 // pred_check
                _
              $region100: #{tpu_custom_call.1} parent=75 // pred_check_branch
                %459 = sbr.rel target = $region102
              $region101: #{tpu_custom_call.1} parent=75 // pred_region
                _
              $region102: #{tpu_custom_call.1} parent=75 // pred_fallthru
                _
            $region76: #{tpu_custom_call.1} parent=71 // pred_fallthru
              _
            // Predicated region
            $region77: #{tpu_custom_call.1} parent=71 // pred_check
              _
            $region78: #{tpu_custom_call.1} parent=71 // pred_check_branch
              %422 = sbr.rel target = $region80
            $region79: #{tpu_custom_call.1} parent=71 // pred_region
              loop: start=0, step=1, limit=1
              $region81: #{tpu_custom_call.1} parent=79 // loop_pre_header
                _
              $region82: #{tpu_custom_call.1} parent=79 // loop_header
                %s425 = sphi 0, %s429
                %p426 = scmp.ge.s32.totalorder %s425, 1
                %s430 = sphi %s416, %s416
                %s431 = sphi %s414, %s414
              $region83: #{tpu_custom_call.1} parent=79 // loop_header_branch
                %428 = sbr.rel (%p426) target = $region87
              $region84: #{tpu_custom_call.1} parent=79 // loop_body
                %v432 = vld [vmem:[%s430] sm:$0xff]
                %433 = vst [vmem:[%s431] sm:$0xff] %v432
                %v434 = vld [vmem:[%s430 + $0x10] sm:$0xff]
                %435 = vst [vmem:[%s431 + $0x8] sm:$0xff] %v434
                %v436 = vld [vmem:[%s430 + $0x20] sm:$0xff]
                %437 = vst [vmem:[%s431 + $0x10] sm:$0xff] %v436
                %v438 = vld [vmem:[%s430 + $0x30] sm:$0xff]
                %439 = vst [vmem:[%s431 + $0x18] sm:$0xff] %v438
              $region85: #{tpu_custom_call.1} parent=79 // loop_footer
                %s429 = sadd.s32 1, %s425
              $region86: #{tpu_custom_call.1} parent=79 // loop_footer_branch
                %424 = sbr.rel target = $region82
              $region87: #{tpu_custom_call.1} parent=79 // loop_exit
                _
            $region80: #{tpu_custom_call.1} parent=71 // pred_fallthru
              _
          $region72: #{tpu_custom_call.1} parent=67 // pred_fallthru
            _
          %460 = vnop
        $region68: #{tpu_custom_call.1} parent=63 // pred_fallthru
          _
        // Predicated region
        $region103: #{tpu_custom_call.1} parent=63 // pred_check
          %p461 = pneg %p69
        $region104: #{tpu_custom_call.1} parent=63 // pred_check_branch
          %463 = sbr.rel (%p461) target = $region106
        $region105: #{tpu_custom_call.1} parent=63 // pred_region
          %s464 = sand.u32 %s59, 1
          %s465 = sand.u32 %s59, 1
          %s466 = smul.addr %s465, 96
          %s467 = scalar_lea.vmem [#allocation3], %s466
          %s468 = smul.addr %s23, 8
          %s469 = scalar_lea.vmem %s1, %s468
          // Predicated region
          $region107: #{tpu_custom_call.1} parent=105 // pred_check
            _
          $region108: #{tpu_custom_call.1} parent=105 // pred_check_branch
            %471 = sbr.rel (0) target = $region110
          $region109: #{tpu_custom_call.1} parent=105 // pred_region
            // Predicated region
            $region111: #{tpu_custom_call.1} parent=109 // pred_check
              _
            $region112: #{tpu_custom_call.1} parent=109 // pred_check_branch
              %473 = sbr.rel (0) target = $region114
            $region113: #{tpu_custom_call.1} parent=109 // pred_region
              // Predicated region
              $region126: #{tpu_custom_call.1} parent=113 // pred_check
                _
              $region127: #{tpu_custom_call.1} parent=113 // pred_check_branch
                %510 = sbr.rel (0) target = $region129
              $region128: #{tpu_custom_call.1} parent=113 // pred_region
                loop: start=0, step=1, limit=1
                $region130: #{tpu_custom_call.1} parent=128 // loop_pre_header
                  _
                $region131: #{tpu_custom_call.1} parent=128 // loop_header
                  %s512 = sphi 0, %s516
                  %p513 = scmp.ge.s32.totalorder %s512, 1
                  %s517 = sphi %s469, %s469
                  %s518 = sphi %s467, %s467
                $region132: #{tpu_custom_call.1} parent=128 // loop_header_branch
                  %515 = sbr.rel (%p513) target = $region136
                $region133: #{tpu_custom_call.1} parent=128 // loop_body
                  %v519 = vld [vmem:[%s517] sm:$0xff]
                  %520 = vst [vmem:[%s518] sm:$0xff] %v519
                  %v521 = vld [vmem:[%s517 + $0x10] sm:$0xff]
                  %522 = vst [vmem:[%s518 + $0x8] sm:$0xff] %v521
                  %v523 = vld [vmem:[%s517 + $0x20] sm:$0xff]
                  %524 = vst [vmem:[%s518 + $0x10] sm:$0xff] %v523
                  %v525 = vld [vmem:[%s517 + $0x30] sm:$0xff]
                  %526 = vst [vmem:[%s518 + $0x18] sm:$0xff] %v525
                  %v527 = vld [vmem:[%s517 + $0x40] sm:$0xff]
                  %528 = vst [vmem:[%s518 + $0x20] sm:$0xff] %v527
                  %v529 = vld [vmem:[%s517 + $0x50] sm:$0xff]
                  %530 = vst [vmem:[%s518 + $0x28] sm:$0xff] %v529
                  %v531 = vld [vmem:[%s517 + $0x60] sm:$0xff]
                  %532 = vst [vmem:[%s518 + $0x30] sm:$0xff] %v531
                  %v533 = vld [vmem:[%s517 + $0x70] sm:$0xff]
                  %534 = vst [vmem:[%s518 + $0x38] sm:$0xff] %v533
                  %v535 = vld [vmem:[%s517 + $0x80] sm:$0xff]
                  %536 = vst [vmem:[%s518 + $0x40] sm:$0xff] %v535
                  %v537 = vld [vmem:[%s517 + $0x90] sm:$0xff]
                  %538 = vst [vmem:[%s518 + $0x48] sm:$0xff] %v537
                  %v539 = vld [vmem:[%s517 + $0xa0] sm:$0xff]
                  %540 = vst [vmem:[%s518 + $0x50] sm:$0xff] %v539
                  %v541 = vld [vmem:[%s517 + $0xb0] sm:$0xff]
                  %542 = vst [vmem:[%s518 + $0x58] sm:$0xff] %v541
                $region134: #{tpu_custom_call.1} parent=128 // loop_footer
                  %s516 = sadd.s32 1, %s512
                $region135: #{tpu_custom_call.1} parent=128 // loop_footer_branch
                  %511 = sbr.rel target = $region131
                $region136: #{tpu_custom_call.1} parent=128 // loop_exit
                  _
              $region129: #{tpu_custom_call.1} parent=113 // pred_fallthru
                _
              // Predicated region
              $region137: #{tpu_custom_call.1} parent=113 // pred_check
                _
              $region138: #{tpu_custom_call.1} parent=113 // pred_check_branch
                %544 = sbr.rel target = $region140
              $region139: #{tpu_custom_call.1} parent=113 // pred_region
                _
              $region140: #{tpu_custom_call.1} parent=113 // pred_fallthru
                _
            $region114: #{tpu_custom_call.1} parent=109 // pred_fallthru
              _
            // Predicated region
            $region115: #{tpu_custom_call.1} parent=109 // pred_check
              _
            $region116: #{tpu_custom_call.1} parent=109 // pred_check_branch
              %475 = sbr.rel target = $region118
            $region117: #{tpu_custom_call.1} parent=109 // pred_region
              loop: start=0, step=1, limit=1
              $region119: #{tpu_custom_call.1} parent=117 // loop_pre_header
                _
              $region120: #{tpu_custom_call.1} parent=117 // loop_header
                %s478 = sphi 0, %s482
                %p479 = scmp.ge.s32.totalorder %s478, 1
                %s483 = sphi %s469, %s469
                %s484 = sphi %s467, %s467
              $region121: #{tpu_custom_call.1} parent=117 // loop_header_branch
                %481 = sbr.rel (%p479) target = $region125
              $region122: #{tpu_custom_call.1} parent=117 // loop_body
                %v485 = vld [vmem:[%s483] sm:$0xff]
                %486 = vst [vmem:[%s484] sm:$0xff] %v485
                %v487 = vld [vmem:[%s483 + $0x10] sm:$0xff]
                %488 = vst [vmem:[%s484 + $0x8] sm:$0xff] %v487
                %v489 = vld [vmem:[%s483 + $0x20] sm:$0xff]
                %490 = vst [vmem:[%s484 + $0x10] sm:$0xff] %v489
                %v491 = vld [vmem:[%s483 + $0x30] sm:$0xff]
                %492 = vst [vmem:[%s484 + $0x18] sm:$0xff] %v491
                %v493 = vld [vmem:[%s483 + $0x40] sm:$0xff]
                %494 = vst [vmem:[%s484 + $0x20] sm:$0xff] %v493
                %v495 = vld [vmem:[%s483 + $0x50] sm:$0xff]
                %496 = vst [vmem:[%s484 + $0x28] sm:$0xff] %v495
                %v497 = vld [vmem:[%s483 + $0x60] sm:$0xff]
                %498 = vst [vmem:[%s484 + $0x30] sm:$0xff] %v497
                %v499 = vld [vmem:[%s483 + $0x70] sm:$0xff]
                %500 = vst [vmem:[%s484 + $0x38] sm:$0xff] %v499
                %v501 = vld [vmem:[%s483 + $0x80] sm:$0xff]
                %502 = vst [vmem:[%s484 + $0x40] sm:$0xff] %v501
                %v503 = vld [vmem:[%s483 + $0x90] sm:$0xff]
                %504 = vst [vmem:[%s484 + $0x48] sm:$0xff] %v503
                %v505 = vld [vmem:[%s483 + $0xa0] sm:$0xff]
                %506 = vst [vmem:[%s484 + $0x50] sm:$0xff] %v505
                %v507 = vld [vmem:[%s483 + $0xb0] sm:$0xff]
                %508 = vst [vmem:[%s484 + $0x58] sm:$0xff] %v507
              $region123: #{tpu_custom_call.1} parent=117 // loop_footer
                %s482 = sadd.s32 1, %s478
              $region124: #{tpu_custom_call.1} parent=117 // loop_footer_branch
                %477 = sbr.rel target = $region120
              $region125: #{tpu_custom_call.1} parent=117 // loop_exit
                _
            $region118: #{tpu_custom_call.1} parent=109 // pred_fallthru
              _
          $region110: #{tpu_custom_call.1} parent=105 // pred_fallthru
            _
          %545 = vnop
        $region106: #{tpu_custom_call.1} parent=63 // pred_fallthru
          _
      $region64: #{tpu_custom_call.1} parent=5 // pred_fallthru
        _
      %p546 = scmp.le.s32.totalorder 1, %s23
      %p547 = scmp.lt.s32.totalorder %s23, 3
      %p548 = pnand %p546, %p547
      %p549 = pneg %p548
      // Predicated region
      $region141: #{tpu_custom_call.1} parent=5 // pred_check
        _
      $region142: #{tpu_custom_call.1} parent=5 // pred_check_branch
        %551 = sbr.rel (%p548) target = $region144
      $region143: #{tpu_custom_call.1} parent=5 // pred_region
        %s552 = ssub.s32 %s23, 1
        %s553 = sand.u32 %s36, 1
        %s554 = sand.u32 %s36, 1
        %s555 = smul.addr %s554, 32
        %s556 = scalar_lea.vmem [#allocation2], %s555
        // Predicated region
        $region145: #{tpu_custom_call.1} parent=143 // pred_check
          %p557 = pneg %p49
        $region146: #{tpu_custom_call.1} parent=143 // pred_check_branch
          %559 = sbr.rel (%p557) target = $region148
        $region147: #{tpu_custom_call.1} parent=143 // pred_region
          _
        $region148: #{tpu_custom_call.1} parent=143 // pred_fallthru
          _
        %s560 = sand.u32 %s62, 1
        %s561 = sand.u32 %s62, 1
        %s562 = smul.addr %s561, 96
        %s563 = scalar_lea.vmem [#allocation3], %s562
        // Predicated region
        $region149: #{tpu_custom_call.1} parent=143 // pred_check
          %p564 = pneg %p75
        $region150: #{tpu_custom_call.1} parent=143 // pred_check_branch
          %566 = sbr.rel (%p564) target = $region152
        $region151: #{tpu_custom_call.1} parent=143 // pred_region
          _
        $region152: #{tpu_custom_call.1} parent=143 // pred_fallthru
          _
        %s567 = sand.u32 %s36, 1
        %s568 = sand.u32 %s36, 1
        %s569 = smul.addr %s568, 32
        %s570 = scalar_lea.vmem [#allocation2], %s569
        %p571 = pneg %p49
        %p572 = pneg %p46
        %s573 = sand.u32 %s62, 1
        %s574 = sand.u32 %s62, 1
        %s575 = smul.addr %s574, 96
        %s576 = scalar_lea.vmem [#allocation3], %s575
        %p577 = pneg %p75
        %p578 = pneg %p72
        %p579 = pneg %p96
        %p580 = pneg %p93
        %p581 = pneg %p117
        %p582 = pneg %p114
        %p583 = pneg %p138
        %p584 = pneg %p135
        %p585 = pneg %p159
        %p586 = pneg %p156
        %p587 = pneg %p180
        %p588 = pneg %p177
        %p589 = pneg %p201
        %p590 = pneg %p198
        %p591 = pneg %p222
        %p592 = pneg %p219
        %p593 = pneg %p243
        %p594 = pneg %p240
        %p595 = pneg %p264
        %p596 = pneg %p261
        %p597 = pneg %p285
        %p598 = pneg %p282
        %p599 = pneg %p306
        %p600 = pneg %p303
        %p601 = pneg %p327
        %p602 = pneg %p324
        %p603 = pneg %p353
        %p604 = pneg %p350
        %s605 = sand.u32 %s340, 1
        %s606 = scalar_lea.sflag [#allocation5], %s605
        %s607 = sand.u32 %s340, 1
        %s608 = smul.addr %s607, 8
        %s609 = scalar_lea.vmem [#allocation4], %s608
        %v610 = vld [vmem:[%s556] sm:$0xff]
        %s611 = scalar_lea.vmem %s556, 8 [#allocation2]
        %v612 = vld [vmem:[%s611] sm:$0xff]
        %s613 = scalar_lea.vmem %s556, 16 [#allocation2]
        %v614 = vld [vmem:[%s613] sm:$0xff]
        %s615 = scalar_lea.vmem %s556, 24 [#allocation2]
        %v616 = vld [vmem:[%s615] sm:$0xff]
        %v617 = vld [vmem:[%s563] sm:$0xff]
        %v618 = vld [vmem:[%s563 + $0x8] sm:$0xff]
        %v619 = vld [vmem:[%s563 + $0x10] sm:$0xff]
        %v620 = vld [vmem:[%s563 + $0x18] sm:$0xff]
        %v621 = vld [vmem:[%s563 + $0x20] sm:$0xff]
        %v622 = vld [vmem:[%s563 + $0x28] sm:$0xff]
        %v623 = vld [vmem:[%s563 + $0x30] sm:$0xff]
        %v624 = vld [vmem:[%s563 + $0x38] sm:$0xff]
        %v625 = vld [vmem:[%s563 + $0x40] sm:$0xff]
        %v626 = vld [vmem:[%s563 + $0x48] sm:$0xff]
        %v627 = vld [vmem:[%s563 + $0x50] sm:$0xff]
        %v628 = vld [vmem:[%s563 + $0x58] sm:$0xff]
        %v629 = vld [vmem:[%s2] sm:$0xf]
        %vm630 = vcmask 31744
        %v632 = vsel %vm630, %v610, 0
        %v635 = vsel %vm630, %v612, 0
        %v638 = vsel %vm630, %v614, 0
        %v641 = vsel %vm630, %v616, 0
        %vm643 = vcmask 1043456
        %v645 = vsel %vm643, %v629, 0
        %647 = vmatprep.subr.mxu0 0.0
        %648 = vmatpush1.msra.mxu0 %v645
        %649 = vmatprep.subr.mxu0 0.0
        %650 = vmatpush1.msra.mxu0 0.0
        %651 = vmatprep.subr.mxu0 0.0
        %652 = vmatpush1.msra.mxu0 0.0
        %653 = vmatprep.subr.mxu0 0.0
        %654 = vmatpush1.msra.mxu0 0.0
        %655 = vmatprep.subr.mxu0 0.0
        %656 = vmatpush1.msra.mxu0 0.0
        %657 = vmatprep.subr.mxu0 0.0
        %658 = vmatpush1.msra.mxu0 0.0
        %659 = vmatprep.subr.mxu0 0.0
        %660 = vmatpush1.msra.mxu0 0.0
        %661 = vmatprep.subr.mxu0 0.0
        %662 = vmatpush1.msra.mxu0 0.0
        %663 = vmatprep.subr.mxu0 0.0
        %664 = vmatpush1.msra.mxu0 0.0
        %665 = vmatprep.subr.mxu0 0.0
        %666 = vmatpush1.msra.mxu0 0.0
        %667 = vmatprep.subr.mxu0 0.0
        %668 = vmatpush1.msra.mxu0 0.0
        %669 = vmatprep.subr.mxu0 0.0
        %670 = vmatpush1.msra.mxu0 0.0
        %671 = vmatprep.subr.mxu0 0.0
        %672 = vmatpush1.msra.mxu0 0.0
        %673 = vmatprep.subr.mxu0 0.0
        %674 = vmatpush1.msra.mxu0 0.0
        %675 = vmatprep.subr.mxu0 0.0
        %676 = vmatpush1.msra.mxu0 0.0
        %677 = vmatprep.subr.mxu0 0.0
        %678 = vmatpush1.msra.mxu0 0.0
        %679 = vmatprep.subr.mxu0 0.0
        %680 = vmatpush1.msra.mxu0 0.0
        %681 = vmatprep.subr.mxu0 0.0
        %682 = vmatpush1.msra.mxu0 0.0
        %683 = vmatprep.subr.mxu0 0.0
        %684 = vmatpush1.msra.mxu0 0.0
        %685 = vmatprep.subr.mxu0 0.0
        %686 = vmatpush1.msra.mxu0 0.0
        %687 = vmatprep.subr.mxu0 0.0
        %688 = vmatpush1.msra.mxu0 0.0
        %689 = vmatprep.subr.mxu0 0.0
        %690 = vmatpush1.msra.mxu0 0.0
        %691 = vmatprep.subr.mxu0 0.0
        %692 = vmatpush1.msra.mxu0 0.0
        %693 = vmatprep.subr.mxu0 0.0
        %694 = vmatpush1.msra.mxu0 0.0
        %695 = vmatprep.subr.mxu0 0.0
        %696 = vmatpush1.msra.mxu0 0.0
        %697 = vmatprep.subr.mxu0 0.0
        %698 = vmatpush1.msra.mxu0 0.0
        %699 = vmatprep.subr.mxu0 0.0
        %700 = vmatpush1.msra.mxu0 0.0
        %701 = vmatprep.subr.mxu0 0.0
        %702 = vmatpush1.msra.mxu0 0.0
        %703 = vmatprep.subr.mxu0 0.0
        %704 = vmatpush1.msra.mxu0 0.0
        %705 = vmatprep.subr.mxu0 0.0
        %706 = vmatpush1.msra.mxu0 0.0
        %707 = vmatprep.subr.mxu0 0.0
        %708 = vmatpush1.msra.mxu0 0.0
        %709 = vmatprep.subr.mxu0 0.0
        %710 = vmatpush1.msra.mxu0 0.0
        %711 = vmatprep.mubr.f32.mxu0 0.0
        %712 = vmatmul.mubr.f32.gmra.mrb[0].mxu0 %v632
        %v713 = vpop.f32.mrb[0].mxu0
        %v714 = vadd.f32 0.0, %v713
        %v715 = vpop.f32.mrb[0].mxu0
        %716 = vmatprep.mubr.f32.mxu0 0.0
        %717 = vmatmul.mubr.f32.gmra.mrb[0].mxu0 %v635
        %v718 = vpop.f32.mrb[0].mxu0
        %v719 = vadd.f32 0.0, %v718
        %v720 = vpop.f32.mrb[0].mxu0
        %721 = vmatprep.mubr.f32.mxu0 0.0
        %722 = vmatmul.mubr.f32.gmra.mrb[0].mxu0 %v638
        %v723 = vpop.f32.mrb[0].mxu0
        %v724 = vadd.f32 0.0, %v723
        %v725 = vpop.f32.mrb[0].mxu0
        %726 = vmatprep.mubr.f32.mxu0 0.0
        %727 = vmatmul.mubr.f32.gmra.mrb[0].mxu0 %v641
        %v728 = vpop.f32.mrb[0].mxu0
        %v729 = vadd.f32 0.0, %v728
        %v730 = vpop.f32.mrb[0].mxu0
        %731 = vdwg.mxu0
        %v732 = vld [vmem:[%s3] sm:$0xf]
        %v734 = vsel %vm643, %v732, 0
        %736 = vmatprep.subr.mxu0 0.0
        %737 = vmatpush1.msra.mxu0 %v734
        %738 = vmatprep.subr.mxu0 0.0
        %739 = vmatpush1.msra.mxu0 0.0
        %740 = vmatprep.subr.mxu0 0.0
        %741 = vmatpush1.msra.mxu0 0.0
        %742 = vmatprep.subr.mxu0 0.0
        %743 = vmatpush1.msra.mxu0 0.0
        %744 = vmatprep.subr.mxu0 0.0
        %745 = vmatpush1.msra.mxu0 0.0
        %746 = vmatprep.subr.mxu0 0.0
        %747 = vmatpush1.msra.mxu0 0.0
        %748 = vmatprep.subr.mxu0 0.0
        %749 = vmatpush1.msra.mxu0 0.0
        %750 = vmatprep.subr.mxu0 0.0
        %751 = vmatpush1.msra.mxu0 0.0
        %752 = vmatprep.subr.mxu0 0.0
        %753 = vmatpush1.msra.mxu0 0.0
        %754 = vmatprep.subr.mxu0 0.0
        %755 = vmatpush1.msra.mxu0 0.0
        %756 = vmatprep.subr.mxu0 0.0
        %757 = vmatpush1.msra.mxu0 0.0
        %758 = vmatprep.subr.mxu0 0.0
        %759 = vmatpush1.msra.mxu0 0.0
        %760 = vmatprep.subr.mxu0 0.0
        %761 = vmatpush1.msra.mxu0 0.0
        %762 = vmatprep.subr.mxu0 0.0
        %763 = vmatpush1.msra.mxu0 0.0
        %764 = vmatprep.subr.mxu0 0.0
        %765 = vmatpush1.msra.mxu0 0.0
        %766 = vmatprep.subr.mxu0 0.0
        %767 = vmatpush1.msra.mxu0 0.0
        %768 = vmatprep.subr.mxu0 0.0
        %769 = vmatpush1.msra.mxu0 0.0
        %770 = vmatprep.subr.mxu0 0.0
        %771 = vmatpush1.msra.mxu0 0.0
        %772 = vmatprep.subr.mxu0 0.0
        %773 = vmatpush1.msra.mxu0 0.0
        %774 = vmatprep.subr.mxu0 0.0
        %775 = vmatpush1.msra.mxu0 0.0
        %776 = vmatprep.subr.mxu0 0.0
        %777 = vmatpush1.msra.mxu0 0.0
        %778 = vmatprep.subr.mxu0 0.0
        %779 = vmatpush1.msra.mxu0 0.0
        %780 = vmatprep.subr.mxu0 0.0
        %781 = vmatpush1.msra.mxu0 0.0
        %782 = vmatprep.subr.mxu0 0.0
        %783 = vmatpush1.msra.mxu0 0.0
        %784 = vmatprep.subr.mxu0 0.0
        %785 = vmatpush1.msra.mxu0 0.0
        %786 = vmatprep.subr.mxu0 0.0
        %787 = vmatpush1.msra.mxu0 0.0
        %788 = vmatprep.subr.mxu0 0.0
        %789 = vmatpush1.msra.mxu0 0.0
        %790 = vmatprep.subr.mxu0 0.0
        %791 = vmatpush1.msra.mxu0 0.0
        %792 = vmatprep.subr.mxu0 0.0
        %793 = vmatpush1.msra.mxu0 0.0
        %794 = vmatprep.subr.mxu0 0.0
        %795 = vmatpush1.msra.mxu0 0.0
        %796 = vmatprep.subr.mxu0 0.0
        %797 = vmatpush1.msra.mxu0 0.0
        %798 = vmatprep.subr.mxu0 0.0
        %799 = vmatpush1.msra.mxu0 0.0
        %800 = vmatprep.mubr.f32.mxu0 0.0
        %801 = vmatmul.mubr.f32.gmra.mrb[0].mxu0 %v632
        %v802 = vpop.f32.mrb[0].mxu0
        %v803 = vadd.f32 0.0, %v802
        %v804 = vpop.f32.mrb[0].mxu0
        %805 = vmatprep.mubr.f32.mxu0 0.0
        %806 = vmatmul.mubr.f32.gmra.mrb[0].mxu0 %v635
        %v807 = vpop.f32.mrb[0].mxu0
        %v808 = vadd.f32 0.0, %v807
        %v809 = vpop.f32.mrb[0].mxu0
        %810 = vmatprep.mubr.f32.mxu0 0.0
        %811 = vmatmul.mubr.f32.gmra.mrb[0].mxu0 %v638
        %v812 = vpop.f32.mrb[0].mxu0
        %v813 = vadd.f32 0.0, %v812
        %v814 = vpop.f32.mrb[0].mxu0
        %815 = vmatprep.mubr.f32.mxu0 0.0
        %816 = vmatmul.mubr.f32.gmra.mrb[0].mxu0 %v641
        %v817 = vpop.f32.mrb[0].mxu0
        %v818 = vadd.f32 0.0, %v817
        %v819 = vpop.f32.mrb[0].mxu0
        %820 = vdwg.mxu0
        %v821 = vadd.f32 %v719, %v803
        %v822 = vadd.f32 %v724, %v803
        %v823 = vadd.f32 %v729, %v803
        %v824 = vadd.f32 %v714, %v808
        %v825 = vadd.f32 %v724, %v808
        %v826 = vadd.f32 %v729, %v808
        %v827 = vadd.f32 %v714, %v813
        %v828 = vadd.f32 %v719, %v813
        %v829 = vadd.f32 %v729, %v813
        %v830 = vadd.f32 %v714, %v818
        %v831 = vadd.f32 %v719, %v818
        %v832 = vadd.f32 %v724, %v818
        %v833 = vld [vmem:[%s4] sm:$0x1]
        %v835 = vlaneseq
        %v836 = vshrl.u32 %v835, 7
        %v837 = vsub.s32 0, %v836
        %v838 = vrot.slane %v833, %v837
        %v840 = vadd.f32 %v821, %v838
        %v841 = vadd.f32 %v822, %v838
        %v842 = vadd.f32 %v823, %v838
        %v843 = vadd.f32 %v824, %v838
        %v844 = vadd.f32 %v825, %v838
        %v845 = vadd.f32 %v826, %v838
        %v846 = vadd.f32 %v827, %v838
        %v847 = vadd.f32 %v828, %v838
        %v848 = vadd.f32 %v829, %v838
        %v849 = vadd.f32 %v830, %v838
        %v850 = vadd.f32 %v831, %v838
        %v851 = vadd.f32 %v832, %v838
        %v852 = vmax.f32 %v840, 0.0
        %v853 = vmax.f32 %v841, 0.0
        %v854 = vmax.f32 %v842, 0.0
        %v855 = vmax.f32 %v843, 0.0
        %v856 = vmax.f32 %v844, 0.0
        %v857 = vmax.f32 %v845, 0.0
        %v858 = vmax.f32 %v846, 0.0
        %v859 = vmax.f32 %v847, 0.0
        %v860 = vmax.f32 %v848, 0.0
        %v861 = vmax.f32 %v849, 0.0
        %v862 = vmax.f32 %v850, 0.0
        %v863 = vmax.f32 %v851, 0.0
        %v864 = vld [vmem:[%s5] sm:$0xff]
        %v865 = vld [vmem:[%s5 + $0x8] sm:$0xff]
        %v866 = vld [vmem:[%s5 + $0x10] sm:$0xff]
        %v867 = vld [vmem:[%s5 + $0x18] sm:$0xff]
        %v868 = vld [vmem:[%s6] sm:$0x1]
        %v870 = vlaneseq
        %v871 = vshrl.u32 %v870, 7
        %v872 = vsub.s32 0, %v871
        %v873 = vrot.slane %v868, %v872
        %vm875 = vcmask 261120
        %v877 = vsel %vm875, %v852, 0
        %v880 = vsel %vm875, %v853, 0
        %v883 = vsel %vm875, %v854, 0
        %v886 = vsel %vm875, %v855, 0
        %v889 = vsel %vm875, %v856, 0
        %v892 = vsel %vm875, %v857, 0
        %v895 = vsel %vm875, %v858, 0
        %v898 = vsel %vm875, %v859, 0
        %v901 = vsel %vm875, %v860, 0
        %v904 = vsel %vm875, %v861, 0
        %v907 = vsel %vm875, %v862, 0
        %v910 = vsel %vm875, %v863, 0
        %912 = vmatprep.subr.mxu0 0.0
        %913 = vmatpush1.msra.mxu0 %v864
        %914 = vmatprep.subr.mxu0 0.0
        %915 = vmatpush1.msra.mxu0 %v865
        %916 = vmatprep.subr.mxu0 0.0
        %917 = vmatpush1.msra.mxu0 %v866
        %918 = vmatprep.subr.mxu0 0.0
        %919 = vmatpush1.msra.mxu0 %v867
        %920 = vmatprep.subr.mxu0 0.0
        %921 = vmatpush1.msra.mxu0 0.0
        %922 = vmatprep.subr.mxu0 0.0
        %923 = vmatpush1.msra.mxu0 0.0
        %924 = vmatprep.subr.mxu0 0.0
        %925 = vmatpush1.msra.mxu0 0.0
        %926 = vmatprep.subr.mxu0 0.0
        %927 = vmatpush1.msra.mxu0 0.0
        %928 = vmatprep.subr.mxu0 0.0
        %929 = vmatpush1.msra.mxu0 0.0
        %930 = vmatprep.subr.mxu0 0.0
        %931 = vmatpush1.msra.mxu0 0.0
        %932 = vmatprep.subr.mxu0 0.0
        %933 = vmatpush1.msra.mxu0 0.0
        %934 = vmatprep.subr.mxu0 0.0
        %935 = vmatpush1.msra.mxu0 0.0
        %936 = vmatprep.subr.mxu0 0.0
        %937 = vmatpush1.msra.mxu0 0.0
        %938 = vmatprep.subr.mxu0 0.0
        %939 = vmatpush1.msra.mxu0 0.0
        %940 = vmatprep.subr.mxu0 0.0
        %941 = vmatpush1.msra.mxu0 0.0
        %942 = vmatprep.subr.mxu0 0.0
        %943 = vmatpush1.msra.mxu0 0.0
        %944 = vmatprep.subr.mxu0 0.0
        %945 = vmatpush1.msra.mxu0 0.0
        %946 = vmatprep.subr.mxu0 0.0
        %947 = vmatpush1.msra.mxu0 0.0
        %948 = vmatprep.subr.mxu0 0.0
        %949 = vmatpush1.msra.mxu0 0.0
        %950 = vmatprep.subr.mxu0 0.0
        %951 = vmatpush1.msra.mxu0 0.0
        %952 = vmatprep.subr.mxu0 0.0
        %953 = vmatpush1.msra.mxu0 0.0
        %954 = vmatprep.subr.mxu0 0.0
        %955 = vmatpush1.msra.mxu0 0.0
        %956 = vmatprep.subr.mxu0 0.0
        %957 = vmatpush1.msra.mxu0 0.0
        %958 = vmatprep.subr.mxu0 0.0
        %959 = vmatpush1.msra.mxu0 0.0
        %960 = vmatprep.subr.mxu0 0.0
        %961 = vmatpush1.msra.mxu0 0.0
        %962 = vmatprep.subr.mxu0 0.0
        %963 = vmatpush1.msra.mxu0 0.0
        %964 = vmatprep.subr.mxu0 0.0
        %965 = vmatpush1.msra.mxu0 0.0
        %966 = vmatprep.subr.mxu0 0.0
        %967 = vmatpush1.msra.mxu0 0.0
        %968 = vmatprep.subr.mxu0 0.0
        %969 = vmatpush1.msra.mxu0 0.0
        %970 = vmatprep.subr.mxu0 0.0
        %971 = vmatpush1.msra.mxu0 0.0
        %972 = vmatprep.subr.mxu0 0.0
        %973 = vmatpush1.msra.mxu0 0.0
        %974 = vmatprep.subr.mxu0 0.0
        %975 = vmatpush1.msra.mxu0 0.0
        %976 = vmatprep.mubr.f32.mxu0 0.0
        %977 = vmatmul.mubr.f32.gmra.mrb[0].mxu0 %v877
        %v978 = vpop.f32.mrb[0].mxu0
        %v979 = vadd.f32 %v873, %v978
        %v980 = vpop.f32.mrb[0].mxu0
        %981 = vmatprep.mubr.f32.mxu0 0.0
        %982 = vmatmul.mubr.f32.gmra.mrb[0].mxu0 %v880
        %v983 = vpop.f32.mrb[0].mxu0
        %v984 = vadd.f32 %v873, %v983
        %v985 = vpop.f32.mrb[0].mxu0
        %986 = vmatprep.mubr.f32.mxu0 0.0
        %987 = vmatmul.mubr.f32.gmra.mrb[0].mxu0 %v883
        %v988 = vpop.f32.mrb[0].mxu0
        %v989 = vadd.f32 %v873, %v988
        %v990 = vpop.f32.mrb[0].mxu0
        %991 = vmatprep.mubr.f32.mxu0 0.0
        %992 = vmatmul.mubr.f32.gmra.mrb[0].mxu0 %v886
        %v993 = vpop.f32.mrb[0].mxu0
        %v994 = vadd.f32 %v873, %v993
        %v995 = vpop.f32.mrb[0].mxu0
        %996 = vmatprep.mubr.f32.mxu0 0.0
        %997 = vmatmul.mubr.f32.gmra.mrb[0].mxu0 %v889
        %v998 = vpop.f32.mrb[0].mxu0
        %v999 = vadd.f32 %v873, %v998
        %v1000 = vpop.f32.mrb[0].mxu0
        %1001 = vmatprep.mubr.f32.mxu0 0.0
        %1002 = vmatmul.mubr.f32.gmra.mrb[0].mxu0 %v892
        %v1003 = vpop.f32.mrb[0].mxu0
        %v1004 = vadd.f32 %v873, %v1003
        %v1005 = vpop.f32.mrb[0].mxu0
        %1006 = vmatprep.mubr.f32.mxu0 0.0
        %1007 = vmatmul.mubr.f32.gmra.mrb[0].mxu0 %v895
        %v1008 = vpop.f32.mrb[0].mxu0
        %v1009 = vadd.f32 %v873, %v1008
        %v1010 = vpop.f32.mrb[0].mxu0
        %1011 = vmatprep.mubr.f32.mxu0 0.0
        %1012 = vmatmul.mubr.f32.gmra.mrb[0].mxu0 %v898
        %v1013 = vpop.f32.mrb[0].mxu0
        %v1014 = vadd.f32 %v873, %v1013
        %v1015 = vpop.f32.mrb[0].mxu0
        %1016 = vmatprep.mubr.f32.mxu0 0.0
        %1017 = vmatmul.mubr.f32.gmra.mrb[0].mxu0 %v901
        %v1018 = vpop.f32.mrb[0].mxu0
        %v1019 = vadd.f32 %v873, %v1018
        %v1020 = vpop.f32.mrb[0].mxu0
        %1021 = vmatprep.mubr.f32.mxu0 0.0
        %1022 = vmatmul.mubr.f32.gmra.mrb[0].mxu0 %v904
        %v1023 = vpop.f32.mrb[0].mxu0
        %v1024 = vadd.f32 %v873, %v1023
        %v1025 = vpop.f32.mrb[0].mxu0
        %1026 = vmatprep.mubr.f32.mxu0 0.0
        %1027 = vmatmul.mubr.f32.gmra.mrb[0].mxu0 %v907
        %v1028 = vpop.f32.mrb[0].mxu0
        %v1029 = vadd.f32 %v873, %v1028
        %v1030 = vpop.f32.mrb[0].mxu0
        %1031 = vmatprep.mubr.f32.mxu0 0.0
        %1032 = vmatmul.mubr.f32.gmra.mrb[0].mxu0 %v910
        %v1033 = vpop.f32.mrb[0].mxu0
        %v1034 = vadd.f32 %v873, %v1033
        %v1035 = vpop.f32.mrb[0].mxu0
        %1036 = vdwg.mxu0
        %v1037 = vmax.f32 %v979, 0.0
        %v1038 = vmax.f32 %v984, 0.0
        %v1039 = vmax.f32 %v989, 0.0
        %v1040 = vmax.f32 %v994, 0.0
        %v1041 = vmax.f32 %v999, 0.0
        %v1042 = vmax.f32 %v1004, 0.0
        %v1043 = vmax.f32 %v1009, 0.0
        %v1044 = vmax.f32 %v1014, 0.0
        %v1045 = vmax.f32 %v1019, 0.0
        %v1046 = vmax.f32 %v1024, 0.0
        %v1047 = vmax.f32 %v1029, 0.0
        %v1048 = vmax.f32 %v1034, 0.0
        %1050 = vset.pattern.permute.xlu0 1
        %1051 = vperm.xlu0 %1050, %v617
        %v1052 = vpop.permute.xlu0 %1051
        %1055 = vset.pattern.permute.xlu0 1
        %1056 = vperm.xlu0 %1055, %v618
        %v1057 = vpop.permute.xlu0 %1056
        %1060 = vset.pattern.permute.xlu0 1
        %1061 = vperm.xlu0 %1060, %v619
        %v1062 = vpop.permute.xlu0 %1061
        %1065 = vset.pattern.permute.xlu0 1
        %1066 = vperm.xlu0 %1065, %v620
        %v1067 = vpop.permute.xlu0 %1066
        %1070 = vset.pattern.permute.xlu0 1
        %1071 = vperm.xlu0 %1070, %v621
        %v1072 = vpop.permute.xlu0 %1071
        %1075 = vset.pattern.permute.xlu0 1
        %1076 = vperm.xlu0 %1075, %v622
        %v1077 = vpop.permute.xlu0 %1076
        %1080 = vset.pattern.permute.xlu0 1
        %1081 = vperm.xlu0 %1080, %v623
        %v1082 = vpop.permute.xlu0 %1081
        %1085 = vset.pattern.permute.xlu0 1
        %1086 = vperm.xlu0 %1085, %v624
        %v1087 = vpop.permute.xlu0 %1086
        %1090 = vset.pattern.permute.xlu0 1
        %1091 = vperm.xlu0 %1090, %v625
        %v1092 = vpop.permute.xlu0 %1091
        %1095 = vset.pattern.permute.xlu0 1
        %1096 = vperm.xlu0 %1095, %v626
        %v1097 = vpop.permute.xlu0 %1096
        %1100 = vset.pattern.permute.xlu0 1
        %1101 = vperm.xlu0 %1100, %v627
        %v1102 = vpop.permute.xlu0 %1101
        %1105 = vset.pattern.permute.xlu0 1
        %1106 = vperm.xlu0 %1105, %v628
        %v1107 = vpop.permute.xlu0 %1106
        %v1109 = vmul.f32 %v1037, %v1052
        %v1110 = vmul.f32 %v1038, %v1057
        %v1111 = vmul.f32 %v1039, %v1062
        %v1112 = vmul.f32 %v1040, %v1067
        %v1113 = vmul.f32 %v1041, %v1072
        %v1114 = vmul.f32 %v1042, %v1077
        %v1115 = vmul.f32 %v1043, %v1082
        %v1116 = vmul.f32 %v1044, %v1087
        %v1117 = vmul.f32 %v1045, %v1092
        %v1118 = vmul.f32 %v1046, %v1097
        %v1119 = vmul.f32 %v1047, %v1102
        %v1120 = vmul.f32 %v1048, %v1107
        %v1121 = vadd.f32 %v1109, %v1110
        %v1122 = vadd.f32 %v1121, %v1111
        %v1123 = vadd.f32 %v1112, %v1113
        %v1124 = vadd.f32 %v1123, %v1114
        %v1125 = vadd.f32 %v1115, %v1116
        %v1126 = vadd.f32 %v1125, %v1117
        %v1127 = vadd.f32 %v1118, %v1119
        %v1128 = vadd.f32 %v1127, %v1120
        %v1129 = vld [vmem:[%s7] sm:$0xf]
        %v1130 = vld [vmem:[%s8] sm:$0xff]
        %v1131 = vld [vmem:[%s8 + $0x8] sm:$0xff]
        %v1132 = vld [vmem:[%s8 + $0x10] sm:$0xff]
        %v1133 = vld [vmem:[%s8 + $0x18] sm:$0xff]
        %v1135 = vsel %vm875, %v1122, 0
        %v1138 = vsel %vm875, %v1124, 0
        %v1141 = vsel %vm875, %v1126, 0
        %v1144 = vsel %vm875, %v1128, 0
        %1146 = vmatprep.subr.mxu0 0.0
        %1147 = vmatpush1.msra.mxu0 %v1130
        %1148 = vmatprep.subr.mxu0 0.0
        %1149 = vmatpush1.msra.mxu0 %v1131
        %1150 = vmatprep.subr.mxu0 0.0
        %1151 = vmatpush1.msra.mxu0 %v1132
        %1152 = vmatprep.subr.mxu0 0.0
        %1153 = vmatpush1.msra.mxu0 %v1133
        %1154 = vmatprep.subr.mxu0 0.0
        %1155 = vmatpush1.msra.mxu0 0.0
        %1156 = vmatprep.subr.mxu0 0.0
        %1157 = vmatpush1.msra.mxu0 0.0
        %1158 = vmatprep.subr.mxu0 0.0
        %1159 = vmatpush1.msra.mxu0 0.0
        %1160 = vmatprep.subr.mxu0 0.0
        %1161 = vmatpush1.msra.mxu0 0.0
        %1162 = vmatprep.subr.mxu0 0.0
        %1163 = vmatpush1.msra.mxu0 0.0
        %1164 = vmatprep.subr.mxu0 0.0
        %1165 = vmatpush1.msra.mxu0 0.0
        %1166 = vmatprep.subr.mxu0 0.0
        %1167 = vmatpush1.msra.mxu0 0.0
        %1168 = vmatprep.subr.mxu0 0.0
        %1169 = vmatpush1.msra.mxu0 0.0
        %1170 = vmatprep.subr.mxu0 0.0
        %1171 = vmatpush1.msra.mxu0 0.0
        %1172 = vmatprep.subr.mxu0 0.0
        %1173 = vmatpush1.msra.mxu0 0.0
        %1174 = vmatprep.subr.mxu0 0.0
        %1175 = vmatpush1.msra.mxu0 0.0
        %1176 = vmatprep.subr.mxu0 0.0
        %1177 = vmatpush1.msra.mxu0 0.0
        %1178 = vmatprep.subr.mxu0 0.0
        %1179 = vmatpush1.msra.mxu0 0.0
        %1180 = vmatprep.subr.mxu0 0.0
        %1181 = vmatpush1.msra.mxu0 0.0
        %1182 = vmatprep.subr.mxu0 0.0
        %1183 = vmatpush1.msra.mxu0 0.0
        %1184 = vmatprep.subr.mxu0 0.0
        %1185 = vmatpush1.msra.mxu0 0.0
        %1186 = vmatprep.subr.mxu0 0.0
        %1187 = vmatpush1.msra.mxu0 0.0
        %1188 = vmatprep.subr.mxu0 0.0
        %1189 = vmatpush1.msra.mxu0 0.0
        %1190 = vmatprep.subr.mxu0 0.0
        %1191 = vmatpush1.msra.mxu0 0.0
        %1192 = vmatprep.subr.mxu0 0.0
        %1193 = vmatpush1.msra.mxu0 0.0
        %1194 = vmatprep.subr.mxu0 0.0
        %1195 = vmatpush1.msra.mxu0 0.0
        %1196 = vmatprep.subr.mxu0 0.0
        %1197 = vmatpush1.msra.mxu0 0.0
        %1198 = vmatprep.subr.mxu0 0.0
        %1199 = vmatpush1.msra.mxu0 0.0
        %1200 = vmatprep.subr.mxu0 0.0
        %1201 = vmatpush1.msra.mxu0 0.0
        %1202 = vmatprep.subr.mxu0 0.0
        %1203 = vmatpush1.msra.mxu0 0.0
        %1204 = vmatprep.subr.mxu0 0.0
        %1205 = vmatpush1.msra.mxu0 0.0
        %1206 = vmatprep.subr.mxu0 0.0
        %1207 = vmatpush1.msra.mxu0 0.0
        %1208 = vmatprep.subr.mxu0 0.0
        %1209 = vmatpush1.msra.mxu0 0.0
        %1210 = vmatprep.mubr.f32.mxu0 0.0
        %1211 = vmatmul.mubr.f32.gmra.mrb[0].mxu0 %v1135
        %v1212 = vpop.f32.mrb[0].mxu0
        %v1213 = vadd.f32 0.0, %v1212
        %v1214 = vpop.f32.mrb[0].mxu0
        %1215 = vmatprep.mubr.f32.mxu0 0.0
        %1216 = vmatmul.mubr.f32.gmra.mrb[0].mxu0 %v1138
        %v1217 = vpop.f32.mrb[0].mxu0
        %v1218 = vadd.f32 0.0, %v1217
        %v1219 = vpop.f32.mrb[0].mxu0
        %1220 = vmatprep.mubr.f32.mxu0 0.0
        %1221 = vmatmul.mubr.f32.gmra.mrb[0].mxu0 %v1141
        %v1222 = vpop.f32.mrb[0].mxu0
        %v1223 = vadd.f32 0.0, %v1222
        %v1224 = vpop.f32.mrb[0].mxu0
        %1225 = vmatprep.mubr.f32.mxu0 0.0
        %1226 = vmatmul.mubr.f32.gmra.mrb[0].mxu0 %v1144
        %v1227 = vpop.f32.mrb[0].mxu0
        %v1228 = vadd.f32 0.0, %v1227
        %v1229 = vpop.f32.mrb[0].mxu0
        %1230 = vdwg.mxu0
        %v1232 = vsel %vm643, %v1129, 0
        %1234 = vmatprep.subr.mxu0 0.0
        %1235 = vmatpush1.msra.mxu0 %v1232
        %1236 = vmatprep.subr.mxu0 0.0
        %1237 = vmatpush1.msra.mxu0 0.0
        %1238 = vmatprep.subr.mxu0 0.0
        %1239 = vmatpush1.msra.mxu0 0.0
        %1240 = vmatprep.subr.mxu0 0.0
        %1241 = vmatpush1.msra.mxu0 0.0
        %1242 = vmatprep.subr.mxu0 0.0
        %1243 = vmatpush1.msra.mxu0 0.0
        %1244 = vmatprep.subr.mxu0 0.0
        %1245 = vmatpush1.msra.mxu0 0.0
        %1246 = vmatprep.subr.mxu0 0.0
        %1247 = vmatpush1.msra.mxu0 0.0
        %1248 = vmatprep.subr.mxu0 0.0
        %1249 = vmatpush1.msra.mxu0 0.0
        %1250 = vmatprep.subr.mxu0 0.0
        %1251 = vmatpush1.msra.mxu0 0.0
        %1252 = vmatprep.subr.mxu0 0.0
        %1253 = vmatpush1.msra.mxu0 0.0
        %1254 = vmatprep.subr.mxu0 0.0
        %1255 = vmatpush1.msra.mxu0 0.0
        %1256 = vmatprep.subr.mxu0 0.0
        %1257 = vmatpush1.msra.mxu0 0.0
        %1258 = vmatprep.subr.mxu0 0.0
        %1259 = vmatpush1.msra.mxu0 0.0
        %1260 = vmatprep.subr.mxu0 0.0
        %1261 = vmatpush1.msra.mxu0 0.0
        %1262 = vmatprep.subr.mxu0 0.0
        %1263 = vmatpush1.msra.mxu0 0.0
        %1264 = vmatprep.subr.mxu0 0.0
        %1265 = vmatpush1.msra.mxu0 0.0
        %1266 = vmatprep.subr.mxu0 0.0
        %1267 = vmatpush1.msra.mxu0 0.0
        %1268 = vmatprep.subr.mxu0 0.0
        %1269 = vmatpush1.msra.mxu0 0.0
        %1270 = vmatprep.subr.mxu0 0.0
        %1271 = vmatpush1.msra.mxu0 0.0
        %1272 = vmatprep.subr.mxu0 0.0
        %1273 = vmatpush1.msra.mxu0 0.0
        %1274 = vmatprep.subr.mxu0 0.0
        %1275 = vmatpush1.msra.mxu0 0.0
        %1276 = vmatprep.subr.mxu0 0.0
        %1277 = vmatpush1.msra.mxu0 0.0
        %1278 = vmatprep.subr.mxu0 0.0
        %1279 = vmatpush1.msra.mxu0 0.0
        %1280 = vmatprep.subr.mxu0 0.0
        %1281 = vmatpush1.msra.mxu0 0.0
        %1282 = vmatprep.subr.mxu0 0.0
        %1283 = vmatpush1.msra.mxu0 0.0
        %1284 = vmatprep.subr.mxu0 0.0
        %1285 = vmatpush1.msra.mxu0 0.0
        %1286 = vmatprep.subr.mxu0 0.0
        %1287 = vmatpush1.msra.mxu0 0.0
        %1288 = vmatprep.subr.mxu0 0.0
        %1289 = vmatpush1.msra.mxu0 0.0
        %1290 = vmatprep.subr.mxu0 0.0
        %1291 = vmatpush1.msra.mxu0 0.0
        %1292 = vmatprep.subr.mxu0 0.0
        %1293 = vmatpush1.msra.mxu0 0.0
        %1294 = vmatprep.subr.mxu0 0.0
        %1295 = vmatpush1.msra.mxu0 0.0
        %1296 = vmatprep.subr.mxu0 0.0
        %1297 = vmatpush1.msra.mxu0 0.0
        %1298 = vmatprep.mubr.f32.mxu0 0.0
        %1299 = vmatmul.mubr.f32.gmra.mrb[0].mxu0 %v632
        %v1300 = vpop.f32.mrb[0].mxu0
        %v1301 = vadd.f32 %v1213, %v1300
        %v1302 = vpop.f32.mrb[0].mxu0
        %1303 = vmatprep.mubr.f32.mxu0 0.0
        %1304 = vmatmul.mubr.f32.gmra.mrb[0].mxu0 %v635
        %v1305 = vpop.f32.mrb[0].mxu0
        %v1306 = vadd.f32 %v1218, %v1305
        %v1307 = vpop.f32.mrb[0].mxu0
        %1308 = vmatprep.mubr.f32.mxu0 0.0
        %1309 = vmatmul.mubr.f32.gmra.mrb[0].mxu0 %v638
        %v1310 = vpop.f32.mrb[0].mxu0
        %v1311 = vadd.f32 %v1223, %v1310
        %v1312 = vpop.f32.mrb[0].mxu0
        %1313 = vmatprep.mubr.f32.mxu0 0.0
        %1314 = vmatmul.mubr.f32.gmra.mrb[0].mxu0 %v641
        %v1315 = vpop.f32.mrb[0].mxu0
        %v1316 = vadd.f32 %v1228, %v1315
        %v1317 = vpop.f32.mrb[0].mxu0
        %1318 = vdwg.mxu0
        %v1319 = vld [vmem:[%s9] sm:$0x1]
        %v1321 = vlaneseq
        %v1322 = vshrl.u32 %v1321, 7
        %v1323 = vsub.s32 0, %v1322
        %v1324 = vrot.slane %v1319, %v1323
        %v1326 = vadd.f32 %v1301, %v1324
        %v1327 = vadd.f32 %v1306, %v1324
        %v1328 = vadd.f32 %v1311, %v1324
        %v1329 = vadd.f32 %v1316, %v1324
        %v1330 = vmax.f32 %v1326, 0.0
        %v1331 = vmax.f32 %v1327, 0.0
        %v1332 = vmax.f32 %v1328, 0.0
        %v1333 = vmax.f32 %v1329, 0.0
        %v1334 = vld [vmem:[%s10] sm:$0xff]
        %v1335 = vld [vmem:[%s10 + $0x8] sm:$0xff]
        %v1336 = vld [vmem:[%s10 + $0x10] sm:$0xff]
        %v1337 = vld [vmem:[%s10 + $0x18] sm:$0xff]
        %v1338 = vld [vmem:[%s11] sm:$0x1]
        %v1340 = vlaneseq
        %v1341 = vshrl.u32 %v1340, 7
        %v1342 = vsub.s32 0, %v1341
        %v1343 = vrot.slane %v1338, %v1342
        %v1346 = vsel %vm875, %v1330, 0
        %v1349 = vsel %vm875, %v1331, 0
        %v1352 = vsel %vm875, %v1332, 0
        %v1355 = vsel %vm875, %v1333, 0
        %1357 = vmatprep.subr.mxu0 0.0
        %1358 = vmatpush1.msra.mxu0 %v1334
        %1359 = vmatprep.subr.mxu0 0.0
        %1360 = vmatpush1.msra.mxu0 %v1335
        %1361 = vmatprep.subr.mxu0 0.0
        %1362 = vmatpush1.msra.mxu0 %v1336
        %1363 = vmatprep.subr.mxu0 0.0
        %1364 = vmatpush1.msra.mxu0 %v1337
        %1365 = vmatprep.subr.mxu0 0.0
        %1366 = vmatpush1.msra.mxu0 0.0
        %1367 = vmatprep.subr.mxu0 0.0
        %1368 = vmatpush1.msra.mxu0 0.0
        %1369 = vmatprep.subr.mxu0 0.0
        %1370 = vmatpush1.msra.mxu0 0.0
        %1371 = vmatprep.subr.mxu0 0.0
        %1372 = vmatpush1.msra.mxu0 0.0
        %1373 = vmatprep.subr.mxu0 0.0
        %1374 = vmatpush1.msra.mxu0 0.0
        %1375 = vmatprep.subr.mxu0 0.0
        %1376 = vmatpush1.msra.mxu0 0.0
        %1377 = vmatprep.subr.mxu0 0.0
        %1378 = vmatpush1.msra.mxu0 0.0
        %1379 = vmatprep.subr.mxu0 0.0
        %1380 = vmatpush1.msra.mxu0 0.0
        %1381 = vmatprep.subr.mxu0 0.0
        %1382 = vmatpush1.msra.mxu0 0.0
        %1383 = vmatprep.subr.mxu0 0.0
        %1384 = vmatpush1.msra.mxu0 0.0
        %1385 = vmatprep.subr.mxu0 0.0
        %1386 = vmatpush1.msra.mxu0 0.0
        %1387 = vmatprep.subr.mxu0 0.0
        %1388 = vmatpush1.msra.mxu0 0.0
        %1389 = vmatprep.subr.mxu0 0.0
        %1390 = vmatpush1.msra.mxu0 0.0
        %1391 = vmatprep.subr.mxu0 0.0
        %1392 = vmatpush1.msra.mxu0 0.0
        %1393 = vmatprep.subr.mxu0 0.0
        %1394 = vmatpush1.msra.mxu0 0.0
        %1395 = vmatprep.subr.mxu0 0.0
        %1396 = vmatpush1.msra.mxu0 0.0
        %1397 = vmatprep.subr.mxu0 0.0
        %1398 = vmatpush1.msra.mxu0 0.0
        %1399 = vmatprep.subr.mxu0 0.0
        %1400 = vmatpush1.msra.mxu0 0.0
        %1401 = vmatprep.subr.mxu0 0.0
        %1402 = vmatpush1.msra.mxu0 0.0
        %1403 = vmatprep.subr.mxu0 0.0
        %1404 = vmatpush1.msra.mxu0 0.0
        %1405 = vmatprep.subr.mxu0 0.0
        %1406 = vmatpush1.msra.mxu0 0.0
        %1407 = vmatprep.subr.mxu0 0.0
        %1408 = vmatpush1.msra.mxu0 0.0
        %1409 = vmatprep.subr.mxu0 0.0
        %1410 = vmatpush1.msra.mxu0 0.0
        %1411 = vmatprep.subr.mxu0 0.0
        %1412 = vmatpush1.msra.mxu0 0.0
        %1413 = vmatprep.subr.mxu0 0.0
        %1414 = vmatpush1.msra.mxu0 0.0
        %1415 = vmatprep.subr.mxu0 0.0
        %1416 = vmatpush1.msra.mxu0 0.0
        %1417 = vmatprep.subr.mxu0 0.0
        %1418 = vmatpush1.msra.mxu0 0.0
        %1419 = vmatprep.subr.mxu0 0.0
        %1420 = vmatpush1.msra.mxu0 0.0
        %1421 = vmatprep.mubr.f32.mxu0 0.0
        %1422 = vmatmul.mubr.f32.gmra.mrb[0].mxu0 %v1346
        %v1423 = vpop.f32.mrb[0].mxu0
        %v1424 = vadd.f32 %v1343, %v1423
        %v1425 = vpop.f32.mrb[0].mxu0
        %1426 = vmatprep.mubr.f32.mxu0 0.0
        %1427 = vmatmul.mubr.f32.gmra.mrb[0].mxu0 %v1349
        %v1428 = vpop.f32.mrb[0].mxu0
        %v1429 = vadd.f32 %v1343, %v1428
        %v1430 = vpop.f32.mrb[0].mxu0
        %1431 = vmatprep.mubr.f32.mxu0 0.0
        %1432 = vmatmul.mubr.f32.gmra.mrb[0].mxu0 %v1352
        %v1433 = vpop.f32.mrb[0].mxu0
        %v1434 = vadd.f32 %v1343, %v1433
        %v1435 = vpop.f32.mrb[0].mxu0
        %1436 = vmatprep.mubr.f32.mxu0 0.0
        %1437 = vmatmul.mubr.f32.gmra.mrb[0].mxu0 %v1355
        %v1438 = vpop.f32.mrb[0].mxu0
        %v1439 = vadd.f32 %v1343, %v1438
        %v1440 = vpop.f32.mrb[0].mxu0
        %1441 = vdwg.mxu0
        %v1442 = vmax.f32 %v1424, 0.0
        %v1443 = vmax.f32 %v1429, 0.0
        %v1444 = vmax.f32 %v1434, 0.0
        %v1445 = vmax.f32 %v1439, 0.0
        %v1446 = vld [vmem:[%s12] sm:$0xff]
        %v1447 = vld [vmem:[%s12 + $0x8] sm:$0xff]
        %v1448 = vld [vmem:[%s12 + $0x10] sm:$0xff]
        %v1449 = vld [vmem:[%s12 + $0x18] sm:$0xff]
        %v1450 = vld [vmem:[%s13] sm:$0x1]
        %v1452 = vlaneseq
        %v1453 = vshrl.u32 %v1452, 7
        %v1454 = vsub.s32 0, %v1453
        %v1455 = vrot.slane %v1450, %v1454
        %v1458 = vsel %vm875, %v1442, 0
        %v1461 = vsel %vm875, %v1443, 0
        %v1464 = vsel %vm875, %v1444, 0
        %v1467 = vsel %vm875, %v1445, 0
        %1469 = vmatprep.subr.mxu0 0.0
        %1470 = vmatpush1.msra.mxu0 %v1446
        %1471 = vmatprep.subr.mxu0 0.0
        %1472 = vmatpush1.msra.mxu0 %v1447
        %1473 = vmatprep.subr.mxu0 0.0
        %1474 = vmatpush1.msra.mxu0 %v1448
        %1475 = vmatprep.subr.mxu0 0.0
        %1476 = vmatpush1.msra.mxu0 %v1449
        %1477 = vmatprep.subr.mxu0 0.0
        %1478 = vmatpush1.msra.mxu0 0.0
        %1479 = vmatprep.subr.mxu0 0.0
        %1480 = vmatpush1.msra.mxu0 0.0
        %1481 = vmatprep.subr.mxu0 0.0
        %1482 = vmatpush1.msra.mxu0 0.0
        %1483 = vmatprep.subr.mxu0 0.0
        %1484 = vmatpush1.msra.mxu0 0.0
        %1485 = vmatprep.subr.mxu0 0.0
        %1486 = vmatpush1.msra.mxu0 0.0
        %1487 = vmatprep.subr.mxu0 0.0
        %1488 = vmatpush1.msra.mxu0 0.0
        %1489 = vmatprep.subr.mxu0 0.0
        %1490 = vmatpush1.msra.mxu0 0.0
        %1491 = vmatprep.subr.mxu0 0.0
        %1492 = vmatpush1.msra.mxu0 0.0
        %1493 = vmatprep.subr.mxu0 0.0
        %1494 = vmatpush1.msra.mxu0 0.0
        %1495 = vmatprep.subr.mxu0 0.0
        %1496 = vmatpush1.msra.mxu0 0.0
        %1497 = vmatprep.subr.mxu0 0.0
        %1498 = vmatpush1.msra.mxu0 0.0
        %1499 = vmatprep.subr.mxu0 0.0
        %1500 = vmatpush1.msra.mxu0 0.0
        %1501 = vmatprep.subr.mxu0 0.0
        %1502 = vmatpush1.msra.mxu0 0.0
        %1503 = vmatprep.subr.mxu0 0.0
        %1504 = vmatpush1.msra.mxu0 0.0
        %1505 = vmatprep.subr.mxu0 0.0
        %1506 = vmatpush1.msra.mxu0 0.0
        %1507 = vmatprep.subr.mxu0 0.0
        %1508 = vmatpush1.msra.mxu0 0.0
        %1509 = vmatprep.subr.mxu0 0.0
        %1510 = vmatpush1.msra.mxu0 0.0
        %1511 = vmatprep.subr.mxu0 0.0
        %1512 = vmatpush1.msra.mxu0 0.0
        %1513 = vmatprep.subr.mxu0 0.0
        %1514 = vmatpush1.msra.mxu0 0.0
        %1515 = vmatprep.subr.mxu0 0.0
        %1516 = vmatpush1.msra.mxu0 0.0
        %1517 = vmatprep.subr.mxu0 0.0
        %1518 = vmatpush1.msra.mxu0 0.0
        %1519 = vmatprep.subr.mxu0 0.0
        %1520 = vmatpush1.msra.mxu0 0.0
        %1521 = vmatprep.subr.mxu0 0.0
        %1522 = vmatpush1.msra.mxu0 0.0
        %1523 = vmatprep.subr.mxu0 0.0
        %1524 = vmatpush1.msra.mxu0 0.0
        %1525 = vmatprep.subr.mxu0 0.0
        %1526 = vmatpush1.msra.mxu0 0.0
        %1527 = vmatprep.subr.mxu0 0.0
        %1528 = vmatpush1.msra.mxu0 0.0
        %1529 = vmatprep.subr.mxu0 0.0
        %1530 = vmatpush1.msra.mxu0 0.0
        %1531 = vmatprep.subr.mxu0 0.0
        %1532 = vmatpush1.msra.mxu0 0.0
        %1533 = vmatprep.mubr.f32.mxu0 0.0
        %1534 = vmatmul.mubr.f32.gmra.mrb[0].mxu0 %v1458
        %v1535 = vpop.f32.mrb[0].mxu0
        %v1536 = vadd.f32 %v1455, %v1535
        %v1537 = vpop.f32.mrb[0].mxu0
        %1538 = vmatprep.mubr.f32.mxu0 0.0
        %1539 = vmatmul.mubr.f32.gmra.mrb[0].mxu0 %v1461
        %v1540 = vpop.f32.mrb[0].mxu0
        %v1541 = vadd.f32 %v1455, %v1540
        %v1542 = vpop.f32.mrb[0].mxu0
        %1543 = vmatprep.mubr.f32.mxu0 0.0
        %1544 = vmatmul.mubr.f32.gmra.mrb[0].mxu0 %v1464
        %v1545 = vpop.f32.mrb[0].mxu0
        %v1546 = vadd.f32 %v1455, %v1545
        %v1547 = vpop.f32.mrb[0].mxu0
        %1548 = vmatprep.mubr.f32.mxu0 0.0
        %1549 = vmatmul.mubr.f32.gmra.mrb[0].mxu0 %v1467
        %v1550 = vpop.f32.mrb[0].mxu0
        %v1551 = vadd.f32 %v1455, %v1550
        %v1552 = vpop.f32.mrb[0].mxu0
        %1553 = vdwg.mxu0
        %v1554 = vadd.f32 %v610, %v1536
        %v1555 = vadd.f32 %v612, %v1541
        %v1556 = vadd.f32 %v614, %v1546
        %v1557 = vadd.f32 %v616, %v1551
        %1559 = vrot.lane.b32.xlu0 %v1555, 4
        %v1560 = vpop.permute.xlu0 %1559
        %1563 = vrot.lane.b32.xlu0 %v1556, 8
        %v1564 = vpop.permute.xlu0 %1563
        %1567 = vrot.lane.b32.xlu0 %v1557, 12
        %v1568 = vpop.permute.xlu0 %1567
        %v1570 = vsel %vm630, %v1554, %v1560
        %vm1571 = vcmask 64512
        %v1572 = vsel %vm1571, %v1570, %v1564
        %vm1573 = vcmask 97280
        %v1574 = vsel %vm1573, %v1572, %v1568
        %vm1575 = vcmask 130048
        %1576 = vst.msk [vmem:[%s609] sm:$0xff] %vm1575, %v1574
        %s1577 = sand.u32 %s340, 1
        %s1578 = scalar_lea.sflag [#allocation5], %s1577
        %s1579 = sand.u32 %s340, 1
        %s1580 = smul.addr %s1579, 8
        %s1581 = scalar_lea.vmem [#allocation4], %s1580
        // Predicated region
        $region153: #{tpu_custom_call.1} parent=143 // pred_check
          %p1582 = pneg %p350
        $region154: #{tpu_custom_call.1} parent=143 // pred_check_branch
          %1584 = sbr.rel (%p1582) target = $region156
        $region155: #{tpu_custom_call.1} parent=143 // pred_region
          %s1586 = ssub.s32 128, 128
          %1587 = vsyncadd %s1578, %s1586
          %s1588 = smul.addr %s28, 128
          %s1589 = scalar_lea.hbm %s14, %s1588
          %s1591 = sshll.u32 %s1581, 4
          %s1592 = int_to_ptr.vmem [resolvable:$true] %s1591
          %1594 = dma.vmem_to_hbm [thread:$0]  %s1592, 128, %s1589, %s1578
        $region156: #{tpu_custom_call.1} parent=143 // pred_fallthru
          _
      $region144: #{tpu_custom_call.1} parent=5 // pred_fallthru
        _
      %p1595 = scmp.le.s32.totalorder 2, %s23
      // Predicated region
      $region157: #{tpu_custom_call.1} parent=5 // pred_check
        %p1596 = pneg %p1595
      $region158: #{tpu_custom_call.1} parent=5 // pred_check_branch
        %1598 = sbr.rel (%p1596) target = $region160
      $region159: #{tpu_custom_call.1} parent=5 // pred_region
        %s1599 = ssub.s32 %s23, 2
        // Predicated region
        $region161: #{tpu_custom_call.1} parent=159 // pred_check
          %p1600 = pneg %p356
        $region162: #{tpu_custom_call.1} parent=159 // pred_check_branch
          %1602 = sbr.rel (%p1600) target = $region164
        $region163: #{tpu_custom_call.1} parent=159 // pred_region
          %s1603 = sand.u32 %s341, 1
          %s1604 = scalar_lea.sflag [#allocation5], %s1603
          %s1605 = sand.u32 %s341, 1
          %s1606 = smul.addr %s1605, 8
          %s1607 = scalar_lea.vmem [#allocation4], %s1606
          %1608 = dma.done %s1604, 128
        $region164: #{tpu_custom_call.1} parent=159 // pred_fallthru
          _
      $region160: #{tpu_custom_call.1} parent=5 // pred_fallthru
        _
    $region6: #{tpu_custom_call.1} parent=1 // loop_footer
      %s27 = sadd.s32 1, %s23
    $region7: #{tpu_custom_call.1} parent=1 // loop_footer_branch
      %22 = sbr.rel target = $region3
    $region8: #{tpu_custom_call.1} parent=1 // loop_exit
      _
    %1609 = vsyncpa [#allocation5], 1
    %s1610 = scalar_lea.sflag [#allocation5], 1
    %1611 = vsyncpa %s1610, 1

</llo_original>
